<compile_context>
chip_gen: v7x
topology: tpu7x:2x2x1
jax: 0.10.0
libtpu: 0.0.40
codegen_flags: <defaults>
</compile_context>

<pallas_src>
import math
import functools

import jax
import jax.numpy as jnp
from jax.experimental import pallas as pl
from jax.experimental.pallas import tpu as pltpu

_LANE = 128
_SUBLANE_BF16 = 16


def _round_up(x, m):
    return ((x + m - 1) // m) * m


# ---------------------------------------------------------------------------
# Kernel
# ---------------------------------------------------------------------------
def _qnet_duel_kernel(n_state_layers, action_dim, m_pad, x_ref, *refs):
    """Fused dueling-Q forward for one batch tile.

    refs layout:
      state MLP             : (w, b) * n_state_layers
      fused val/adv layer-1 : (w_h, b_h)   w_h = [Wv1 | Wa1]  (m_pad, 2*m_pad)
      val layer-2           : (wv2, bv2)   (m_pad, a_pad)
      adv layer-2           : (wa2, ba2)   (m_pad, 128)       (only column 0 is real)
      out_ref               : (tile_b, a_pad) bf16
    Weights bf16, biases f32; all padded rows / columns are exactly zero.
    """
    out_ref = refs[-1]
    p = refs[:-1]

    def linear(h_bf16, w_ref, b_ref):
        # bf16 operands into the MXU, f32 accumulate, f32 bias add on the VPU.
        return jnp.dot(h_bf16, w_ref[...], preferred_element_type=jnp.float32) + b_ref[...]

    def hardswish(x):
        # PyTorch nn.Hardswish: x * relu6(x + 3) / 6   (pure VPU ops, f32)
        return x * jnp.clip(x + 3.0, 0.0, 6.0) * (1.0 / 6.0)

    # --- net_state: Linear -> ReLU -> ... -> Linear (no activation after last) ---
    h = x_ref[...]                                    # already bf16
    for i in range(n_state_layers):
        z = linear(h, p[2 * i], p[2 * i + 1])         # f32
        if i < n_state_layers - 1:
            z = jnp.maximum(z, 0.0)                   # ReLU (VPU)
        h = z.astype(jnp.bfloat16)                    # single bf16 cast per layer
    s_tmp = h                                         # (tile_b, m_pad) bf16

    o = 2 * n_state_layers

    # --- fused first layer of both heads: one full-width MXU matmul, then split ---
    hh = hardswish(linear(s_tmp, p[o + 0], p[o + 1])).astype(jnp.bfloat16)  # (tile_b, 2*m_pad)
    hv = hh[:, :m_pad]                                # val branch (padded cols are exactly 0)
    ha = hh[:, m_pad:]                                # adv branch (padded cols are exactly 0)

    q_val = linear(hv, p[o + 2], p[o + 3])            # (tile_b, a_pad); padded cols == 0
    q_adv = linear(ha, p[o + 4], p[o + 5])            # (tile_b, 128);  only col 0 real, rest == 0
    adv = jnp.sum(q_adv, axis=-1, keepdims=True)      # recover scalar advantage (pads are 0)

    # Dueling mean over REAL action columns only: padded q_val columns are exactly 0,
    # so the full-width lane sum equals the true sum; divide by the true action_dim.
    q_mean = jnp.sum(q_val, axis=-1, keepdims=True) * (1.0 / float(action_dim))

    # NOTE: padded output columns hold (adv - q_mean), not 0 -- the wrapper slices them off.
    out_ref[...] = (q_val - q_mean + adv).astype(out_ref.dtype)


# ---------------------------------------------------------------------------
# One-time parameter preparation (hoisted out of the per-call path)
# ---------------------------------------------------------------------------
def _pad_linear(w, b, in_pad, out_pad):
    """Zero-pad a (in, out) weight / (1, out) bias. Weight -> bf16, bias -> f32."""
    wi, wo = w.shape
    w_p = jnp.zeros((in_pad, out_pad), jnp.bfloat16).at[:wi, :wo].set(w.astype(jnp.bfloat16))
    b_p = jnp.zeros((1, out_pad), jnp.float32).at[:, :wo].set(
        b.astype(jnp.float32).reshape(1, -1))
    return w_p, b_p


def prepare_qnet_duel_params(params):
    """Pad / cast / fuse parameters ONCE. Returns (flat_param_tuple, meta_dict)."""
    state_p, val_p, adv_p = params["state"], params["val"], params["adv"]
    n_state_layers = len(state_p)
    state_dim = state_p[0][0].shape[0]
    mid_dim = val_p[0][0].shape[0]
    action_dim = val_p[1][0].shape[1]

    s_in = _round_up(state_dim, _SUBLANE_BF16)       # NOT 128: keeps the state read narrow
    m_pad = _round_up(mid_dim, _LANE)
    a_pad = _round_up(action_dim, _LANE)
    adv_pad = _LANE                                  # adv head output dim 1 -> 128 lanes

    flat = []
    in_dims = [s_in] + [m_pad] * (n_state_layers - 1)
    for (w, b), ip in zip(state_p, in_dims):
        flat.extend(_pad_linear(w, b, ip, m_pad))

    # Fuse the two heads' first Linears into one (m_pad, 2*m_pad) weight.
    (wv1, bv1), (wv2, bv2) = val_p
    (wa1, ba1), (wa2, ba2) = adv_p
    w_h = jnp.zeros((m_pad, 2 * m_pad), jnp.bfloat16)
    w_h = w_h.at[:mid_dim, :mid_dim].set(wv1.astype(jnp.bfloat16))
    w_h = w_h.at[:mid_dim, m_pad:m_pad + mid_dim].set(wa1.astype(jnp.bfloat16))
    b_h = jnp.zeros((1, 2 * m_pad), jnp.float32)
    b_h = b_h.at[:, :mid_dim].set(bv1.astype(jnp.float32).reshape(1, -1))
    b_h = b_h.at[:, m_pad:m_pad + mid_dim].set(ba1.astype(jnp.float32).reshape(1, -1))
    flat.extend([w_h, b_h])

    flat.extend(_pad_linear(wv2, bv2, m_pad, a_pad))
    flat.extend(_pad_linear(wa2, ba2, m_pad, adv_pad))

    flat = tuple(jax.device_put(t) for t in flat)
    param_bytes = sum(int(t.size) * t.dtype.itemsize for t in flat)

    meta = dict(n_state_layers=n_state_layers, state_dim=state_dim, s_in=s_in,
                mid_dim=mid_dim, m_pad=m_pad, action_dim=action_dim,
                a_pad=a_pad, adv_pad=adv_pad, param_bytes=param_bytes)
    return flat, meta


# ---------------------------------------------------------------------------
# Forward wrapper
# ---------------------------------------------------------------------------
_SINGLE_BUFFER_WEIGHTS = None   # resolved on first call (probe for pl.Buffered(1) support)


def _weight_spec(shape, single_buffer):
    if single_buffer:
        # Constant block -> no need to double-buffer: halves resident-parameter VMEM (v7x).
        return pl.BlockSpec(shape, lambda i: (0, 0), pipeline_mode=pl.Buffered(1))
    return pl.BlockSpec(shape, lambda i: (0, 0))


def _pick_tile_b(batch, m_pad, max_tile_b):
    if batch < 64:
        tile_b = batch                                          # block == full array: always legal
    elif batch < 1024:
        tile_b = _round_up(pl.cdiv(batch, 2), _SUBLANE_BF16)    # >= 2 tiles (v7x megacore)
    else:
        tile_b = max(256, _round_up(pl.cdiv(batch, 4), _SUBLANE_BF16))  # ~4 tiles: overlap DMA/MXU
    tile_b = min(tile_b, max_tile_b)
    # Keep per-tile activation footprint v7x-safe (64 MiB physical VMEM).
    while tile_b > 256 and 10 * tile_b * m_pad * 4 > 36 * 1024 * 1024:
        tile_b //= 2
    return tile_b


def qnet_duel_forward(state, flat, meta, *, max_tile_b=1024):
    """state: (batch, state_dim). flat/meta: from prepare_qnet_duel_params.
    Returns (batch, action_dim) f32."""
    global _SINGLE_BUFFER_WEIGHTS

    batch, state_dim = state.shape
    assert state_dim == meta["state_dim"]
    n_state_layers = meta["n_state_layers"]
    s_in, m_pad = meta["s_in"], meta["m_pad"]
    a_pad, adv_pad = meta["a_pad"], meta["adv_pad"]
    action_dim = meta["action_dim"]
    param_bytes = meta["param_bytes"]

    tile_b = _pick_tile_b(batch, m_pad, max_tile_b)
    b_pad = _round_up(batch, tile_b)

    # bf16 state; pad only what is actually needed (no 128-lane padding of the read stream).
    x = state.astype(jnp.bfloat16)
    if s_in > state_dim or b_pad > batch:
        x = jnp.pad(x, ((0, b_pad - batch), (0, s_in - state_dim)))

    # VMEM budget: 2x-buffered in/out tiles + (conservatively double-buffered) resident params
    # + live f32/bf16 activations (dominated by the fused-head (tile_b, 2*m_pad) tile).
    vmem_need = (2 * tile_b * s_in * 2
                 + 2 * tile_b * a_pad * 2
                 + 2 * param_bytes
                 + 10 * tile_b * m_pad * 4)
    vmem_limit = int(min(48 * 1024 * 1024, max(32 * 1024 * 1024, int(1.25 * vmem_need))))

    # Advisory cost estimate (padded shapes = actual kernel work).
    flops = 2 * b_pad * (s_in * m_pad
                         + (n_state_layers - 1) * m_pad * m_pad
                         + m_pad * (2 * m_pad)
                         + m_pad * a_pad
                         + m_pad * adv_pad)
    bytes_accessed = b_pad * s_in * 2 + b_pad * a_pad * 2 + param_bytes
    cost = pl.CostEstimate(flops=int(flops), transcendentals=0,
                           bytes_accessed=int(bytes_accessed))

    kernel = functools.partial(_qnet_duel_kernel, n_state_layers, action_dim, m_pad)
    out_shape = jax.ShapeDtypeStruct((b_pad, a_pad), jnp.bfloat16)   # bf16 halves the write stream

    modes = (True, False) if _SINGLE_BUFFER_WEIGHTS is None else (_SINGLE_BUFFER_WEIGHTS,)
    out_padded, last_err = None, None
    for single_buffer in modes:
        in_specs = ([pl.BlockSpec((tile_b, s_in), lambda i: (i, 0))]
                    + [_weight_spec(t.shape, single_buffer) for t in flat])
        call = pl.pallas_call(
            kernel,
            out_shape=out_shape,
            grid=(b_pad // tile_b,),
            in_specs=in_specs,
            out_specs=pl.BlockSpec((tile_b, a_pad), lambda i: (i, 0)),
            compiler_params=pltpu.CompilerParams(
                dimension_semantics=("parallel",),
                vmem_limit_bytes=vmem_limit),
            cost_estimate=cost,
        )
        try:
            out_padded = call(x, *flat)
            if _SINGLE_BUFFER_WEIGHTS is None:
                out_padded = jax.block_until_ready(out_padded)   # force compile on the probe call
                _SINGLE_BUFFER_WEIGHTS = single_buffer
            break
        except Exception as e:   # pl.Buffered(1) unsupported -> fall back to double-buffered specs
            last_err = e
            out_padded = None
    if out_padded is None:
        raise last_err

    return out_padded[:batch, :action_dim].astype(jnp.float32)


# ---------------------------------------------------------------------------
# Init + pure-JAX reference
# ---------------------------------------------------------------------------
def init_qnet_duel_params(key, mid_dim, num_layer, state_dim, action_dim):
    """Deterministic init mirroring nn.Linear default (uniform +/- 1/sqrt(fan_in)).
    Weights stored as (in, out); biases as (1, out)."""
    def make_linear(k, fan_in, fan_out):
        kw, kb = jax.random.split(k)
        bound = 1.0 / math.sqrt(fan_in)
        w = jax.random.uniform(kw, (fan_in, fan_out), jnp.float32, -bound, bound)
        b = jax.random.uniform(kb, (1, fan_out), jnp.float32, -bound, bound)
        return w, b

    # net_state = build_mlp(mid_dim, num_layer - 1, state_dim, mid_dim)
    n_state = num_layer - 1
    assert n_state >= 1
    if n_state == 1:
        dims = [(state_dim, mid_dim)]
    else:
        dims = ([(state_dim, mid_dim)]
                + [(mid_dim, mid_dim)] * (n_state - 2)
                + [(mid_dim, mid_dim)])

    state_p = []
    for (fi, fo) in dims:
        key, k = jax.random.split(key)
        state_p.append(make_linear(k, fi, fo))

    key, k1, k2, k3, k4 = jax.random.split(key, 5)
    val_p = [make_linear(k1, mid_dim, mid_dim), make_linear(k2, mid_dim, action_dim)]
    adv_p = [make_linear(k3, mid_dim, mid_dim), make_linear(k4, mid_dim, 1)]
    return {"state": state_p, "val": val_p, "adv": adv_p}


def qnet_duel_forward_ref(state, params):
    """Pure-JAX f32 reference for correctness check."""
    def hardswish(x):
        return x * jnp.clip(x + 3.0, 0.0, 6.0) / 6.0

    h = state
    sp = params["state"]
    for i, (w, b) in enumerate(sp):
        h = h @ w + b
        if i < len(sp) - 1:
            h = jnp.maximum(h, 0.0)
    (wv1, bv1), (wv2, bv2) = params["val"]
    (wa1, ba1), (wa2, ba2) = params["adv"]
    q_val = hardswish(h @ wv1 + bv1) @ wv2 + bv2
    q_adv = hardswish(h @ wa1 + ba1) @ wa2 + ba2
    return q_val - q_val.mean(axis=1, keepdims=True) + q_adv


if __name__ == "__main__":
    # Small shapes consistent with QNetDuel(mid_dim, num_layer, state_dim, action_dim)
    batch, state_dim, mid_dim, action_dim, num_layer = 8, 16, 32, 4, 3

    key = jax.random.PRNGKey(0)
    key, k_state = jax.random.split(key)
    state = jax.random.normal(k_state, (batch, state_dim), jnp.float32)

    params = init_qnet_duel_params(key, mid_dim, num_layer, state_dim, action_dim)
    flat, meta = prepare_qnet_duel_params(params)   # pad/cast/fuse ONCE, outside the forward path

    out = qnet_duel_forward(state, flat, meta)
    out = jax.block_until_ready(out)

    ref = qnet_duel_forward_ref(state, params)
    assert out.shape == (batch, action_dim)
    # bf16 MXU operands + bf16 output store vs. pure-f32 reference -> modest tolerance.
    assert jnp.allclose(out, ref, atol=5e-2, rtol=5e-2), "mismatch vs reference"

    # TODO(synk): get_action's numpy-random epsilon-greedy branch is host-side control flow,
    # not part of forward(); intentionally not implemented as a kernel.
    print("KERNEL_OK")
</pallas_src>

<mosaic_0001>
module attributes {stable_mosaic.version = 11 : i64} {
  func.func @_qnet_duel_kernel(%arg0: i32, %arg1: memref<8x16xbf16, #tpu.memory_space<vmem>>, %arg2: memref<16x128xbf16, #tpu.memory_space<vmem>>, %arg3: memref<1x128xf32, #tpu.memory_space<vmem>>, %arg4: memref<128x128xbf16, #tpu.memory_space<vmem>>, %arg5: memref<1x128xf32, #tpu.memory_space<vmem>>, %arg6: memref<128x256xbf16, #tpu.memory_space<vmem>>, %arg7: memref<1x256xf32, #tpu.memory_space<vmem>>, %arg8: memref<128x128xbf16, #tpu.memory_space<vmem>>, %arg9: memref<1x128xf32, #tpu.memory_space<vmem>>, %arg10: memref<128x128xbf16, #tpu.memory_space<vmem>>, %arg11: memref<1x128xf32, #tpu.memory_space<vmem>>, %arg12: memref<8x128xbf16, #tpu.memory_space<vmem>>) attributes {dimension_semantics = [#tpu.dimension_semantics<parallel>], iteration_bounds = array<i64: 1>, scalar_prefetch = 0 : i64, scratch_operands = 0 : i64, tpu.core_type = #tpu.core_type<tc>, window_params = [{transform_indices = @transform_0, window_bounds = array<i64: 8, 16>}, {pipeline_mode = #tpu.pipeline_mode<synchronous>, transform_indices = @transform_1, window_bounds = array<i64: 16, 128>}, {pipeline_mode = #tpu.pipeline_mode<synchronous>, transform_indices = @transform_2, window_bounds = array<i64: 1, 128>}, {pipeline_mode = #tpu.pipeline_mode<synchronous>, transform_indices = @transform_3, window_bounds = array<i64: 128, 128>}, {pipeline_mode = #tpu.pipeline_mode<synchronous>, transform_indices = @transform_4, window_bounds = array<i64: 1, 128>}, {pipeline_mode = #tpu.pipeline_mode<synchronous>, transform_indices = @transform_5, window_bounds = array<i64: 128, 256>}, {pipeline_mode = #tpu.pipeline_mode<synchronous>, transform_indices = @transform_6, window_bounds = array<i64: 1, 256>}, {pipeline_mode = #tpu.pipeline_mode<synchronous>, transform_indices = @transform_7, window_bounds = array<i64: 128, 128>}, {pipeline_mode = #tpu.pipeline_mode<synchronous>, transform_indices = @transform_8, window_bounds = array<i64: 1, 128>}, {pipeline_mode = #tpu.pipeline_mode<synchronous>, transform_indices = @transform_9, window_bounds = array<i64: 128, 128>}, {pipeline_mode = #tpu.pipeline_mode<synchronous>, transform_indices = @transform_10, window_bounds = array<i64: 1, 128>}, {transform_indices = @transform_11, window_bounds = array<i64: 8, 128>}]} {
    %c0 = arith.constant 0 : index
    %c0_0 = arith.constant 0 : index
    %0 = vector.load %arg1[%c0, %c0_0] : memref<8x16xbf16, #tpu.memory_space<vmem>>, vector<8x16xbf16>
    %c0_1 = arith.constant 0 : index
    %c0_2 = arith.constant 0 : index
    %1 = vector.load %arg2[%c0_1, %c0_2] : memref<16x128xbf16, #tpu.memory_space<vmem>>, vector<16x128xbf16>
    %cst = arith.constant dense<0.000000e+00> : vector<8x128xf32>
    %2 = tpu.matmul %0, %1, %cst {dimension_numbers = #tpu.dot_dimension_numbers<[1], [0], [0], [1], [0, 0, 1, 1], [], []>} : vector<8x16xbf16>, vector<16x128xbf16>, vector<8x128xf32> -> vector<8x128xf32>
    %c0_3 = arith.constant 0 : index
    %c0_4 = arith.constant 0 : index
    %3 = vector.load %arg3[%c0_3, %c0_4] : memref<1x128xf32, #tpu.memory_space<vmem>>, vector<1x128xf32>
    %4 = vector.broadcast %3 : vector<1x128xf32> to vector<8x128xf32>
    %5 = arith.addf %2, %4 : vector<8x128xf32>
    %cst_5 = arith.constant 0.000000e+00 : f32
    %6 = vector.broadcast %cst_5 : f32 to vector<8x128xf32>
    %7 = arith.maximumf %5, %6 : vector<8x128xf32>
    %8 = arith.truncf %7 : vector<8x128xf32> to vector<8x128xbf16>
    %c0_6 = arith.constant 0 : index
    %c0_7 = arith.constant 0 : index
    %9 = vector.load %arg4[%c0_6, %c0_7] : memref<128x128xbf16, #tpu.memory_space<vmem>>, vector<128x128xbf16>
    %cst_8 = arith.constant dense<0.000000e+00> : vector<8x128xf32>
    %10 = tpu.matmul %8, %9, %cst_8 {dimension_numbers = #tpu.dot_dimension_numbers<[1], [0], [0], [1], [0, 0, 1, 1], [], []>} : vector<8x128xbf16>, vector<128x128xbf16>, vector<8x128xf32> -> vector<8x128xf32>
    %c0_9 = arith.constant 0 : index
    %c0_10 = arith.constant 0 : index
    %11 = vector.load %arg5[%c0_9, %c0_10] : memref<1x128xf32, #tpu.memory_space<vmem>>, vector<1x128xf32>
    %12 = vector.broadcast %11 : vector<1x128xf32> to vector<8x128xf32>
    %13 = arith.addf %10, %12 : vector<8x128xf32>
    %14 = arith.truncf %13 : vector<8x128xf32> to vector<8x128xbf16>
    %c0_11 = arith.constant 0 : index
    %c0_12 = arith.constant 0 : index
    %15 = vector.load %arg6[%c0_11, %c0_12] : memref<128x256xbf16, #tpu.memory_space<vmem>>, vector<128x256xbf16>
    %cst_13 = arith.constant dense<0.000000e+00> : vector<8x256xf32>
    %16 = tpu.matmul %14, %15, %cst_13 {dimension_numbers = #tpu.dot_dimension_numbers<[1], [0], [0], [1], [0, 0, 1, 1], [], []>} : vector<8x128xbf16>, vector<128x256xbf16>, vector<8x256xf32> -> vector<8x256xf32>
    %c0_14 = arith.constant 0 : index
    %c0_15 = arith.constant 0 : index
    %17 = vector.load %arg7[%c0_14, %c0_15] : memref<1x256xf32, #tpu.memory_space<vmem>>, vector<1x256xf32>
    %18 = vector.broadcast %17 : vector<1x256xf32> to vector<8x256xf32>
    %19 = arith.addf %16, %18 : vector<8x256xf32>
    %cst_16 = arith.constant 3.000000e+00 : f32
    %20 = vector.broadcast %cst_16 : f32 to vector<8x256xf32>
    %21 = arith.addf %19, %20 : vector<8x256xf32>
    %cst_17 = arith.constant 0.000000e+00 : f32
    %cst_18 = arith.constant 6.000000e+00 : f32
    %22 = vector.broadcast %cst_17 : f32 to vector<8x256xf32>
    %23 = arith.maximumf %22, %21 : vector<8x256xf32>
    %24 = vector.broadcast %cst_18 : f32 to vector<8x256xf32>
    %25 = arith.minimumf %24, %23 : vector<8x256xf32>
    %26 = arith.mulf %19, %25 : vector<8x256xf32>
    %cst_19 = arith.constant 0.166666672 : f32
    %27 = vector.broadcast %cst_19 : f32 to vector<8x256xf32>
    %28 = arith.mulf %26, %27 : vector<8x256xf32>
    %29 = arith.truncf %28 : vector<8x256xf32> to vector<8x256xbf16>
    %30 = vector.extract_strided_slice %29 {offsets = [0, 0], sizes = [8, 128], strides = [1, 1]} : vector<8x256xbf16> to vector<8x128xbf16>
    %31 = vector.extract_strided_slice %29 {offsets = [0, 128], sizes = [8, 128], strides = [1, 1]} : vector<8x256xbf16> to vector<8x128xbf16>
    %c0_20 = arith.constant 0 : index
    %c0_21 = arith.constant 0 : index
    %32 = vector.load %arg8[%c0_20, %c0_21] : memref<128x128xbf16, #tpu.memory_space<vmem>>, vector<128x128xbf16>
    %cst_22 = arith.constant dense<0.000000e+00> : vector<8x128xf32>
    %33 = tpu.matmul %30, %32, %cst_22 {dimension_numbers = #tpu.dot_dimension_numbers<[1], [0], [0], [1], [0, 0, 1, 1], [], []>} : vector<8x128xbf16>, vector<128x128xbf16>, vector<8x128xf32> -> vector<8x128xf32>
    %c0_23 = arith.constant 0 : index
    %c0_24 = arith.constant 0 : index
    %34 = vector.load %arg9[%c0_23, %c0_24] : memref<1x128xf32, #tpu.memory_space<vmem>>, vector<1x128xf32>
    %35 = vector.broadcast %34 : vector<1x128xf32> to vector<8x128xf32>
    %36 = arith.addf %33, %35 : vector<8x128xf32>
    %c0_25 = arith.constant 0 : index
    %c0_26 = arith.constant 0 : index
    %37 = vector.load %arg10[%c0_25, %c0_26] : memref<128x128xbf16, #tpu.memory_space<vmem>>, vector<128x128xbf16>
    %cst_27 = arith.constant dense<0.000000e+00> : vector<8x128xf32>
    %38 = tpu.matmul %31, %37, %cst_27 {dimension_numbers = #tpu.dot_dimension_numbers<[1], [0], [0], [1], [0, 0, 1, 1], [], []>} : vector<8x128xbf16>, vector<128x128xbf16>, vector<8x128xf32> -> vector<8x128xf32>
    %c0_28 = arith.constant 0 : index
    %c0_29 = arith.constant 0 : index
    %39 = vector.load %arg11[%c0_28, %c0_29] : memref<1x128xf32, #tpu.memory_space<vmem>>, vector<1x128xf32>
    %40 = vector.broadcast %39 : vector<1x128xf32> to vector<8x128xf32>
    %41 = arith.addf %38, %40 : vector<8x128xf32>
    %cst_30 = arith.constant dense<0.000000e+00> : vector<8xf32>
    %42 = vector.multi_reduction <add>, %41, %cst_30 [1] : vector<8x128xf32> to vector<8xf32>
    %43 = vector.shape_cast %42 : vector<8xf32> to vector<8x1xf32>
    %cst_31 = arith.constant dense<0.000000e+00> : vector<8xf32>
    %44 = vector.multi_reduction <add>, %36, %cst_31 [1] : vector<8x128xf32> to vector<8xf32>
    %45 = vector.shape_cast %44 : vector<8xf32> to vector<8x1xf32>
    %cst_32 = arith.constant 2.500000e-01 : f32
    %46 = vector.broadcast %cst_32 : f32 to vector<8x1xf32>
    %47 = arith.mulf %45, %46 : vector<8x1xf32>
    %48 = vector.broadcast %47 : vector<8x1xf32> to vector<8x128xf32>
    %49 = arith.subf %36, %48 : vector<8x128xf32>
    %50 = vector.broadcast %43 : vector<8x1xf32> to vector<8x128xf32>
    %51 = arith.addf %49, %50 : vector<8x128xf32>
    %52 = arith.truncf %51 : vector<8x128xf32> to vector<8x128xbf16>
    %c0_33 = arith.constant 0 : index
    %c0_34 = arith.constant 0 : index
    %53 = vector.load %arg12[%c0_33, %c0_34] : memref<8x128xbf16, #tpu.memory_space<vmem>>, vector<8x128xbf16>
    tpu.vector_store %arg12[%c0_33, %c0_34], %52 {strides = array<i32>} : memref<8x128xbf16, #tpu.memory_space<vmem>>, vector<8x128xbf16>,
    return
  }
  func.func @transform_0(%arg0: i32) -> (i32, i32) {
    %c0_i32 = arith.constant 0 : i32
    %c0_i32_0 = arith.constant 0 : i32
    return %arg0, %c0_i32 : i32, i32
  }
  func.func @transform_1(%arg0: i32) -> (i32, i32) {
    %c0_i32 = arith.constant 0 : i32
    %c0_i32_0 = arith.constant 0 : i32
    %c0_i32_1 = arith.constant 0 : i32
    return %c0_i32, %c0_i32_0 : i32, i32
  }
  func.func @transform_2(%arg0: i32) -> (i32, i32) {
    %c0_i32 = arith.constant 0 : i32
    %c0_i32_0 = arith.constant 0 : i32
    %c0_i32_1 = arith.constant 0 : i32
    return %c0_i32, %c0_i32_0 : i32, i32
  }
  func.func @transform_3(%arg0: i32) -> (i32, i32) {
    %c0_i32 = arith.constant 0 : i32
    %c0_i32_0 = arith.constant 0 : i32
    %c0_i32_1 = arith.constant 0 : i32
    return %c0_i32, %c0_i32_0 : i32, i32
  }
  func.func @transform_4(%arg0: i32) -> (i32, i32) {
    %c0_i32 = arith.constant 0 : i32
    %c0_i32_0 = arith.constant 0 : i32
    %c0_i32_1 = arith.constant 0 : i32
    return %c0_i32, %c0_i32_0 : i32, i32
  }
  func.func @transform_5(%arg0: i32) -> (i32, i32) {
    %c0_i32 = arith.constant 0 : i32
    %c0_i32_0 = arith.constant 0 : i32
    %c0_i32_1 = arith.constant 0 : i32
    return %c0_i32, %c0_i32_0 : i32, i32
  }
  func.func @transform_6(%arg0: i32) -> (i32, i32) {
    %c0_i32 = arith.constant 0 : i32
    %c0_i32_0 = arith.constant 0 : i32
    %c0_i32_1 = arith.constant 0 : i32
    return %c0_i32, %c0_i32_0 : i32, i32
  }
  func.func @transform_7(%arg0: i32) -> (i32, i32) {
    %c0_i32 = arith.constant 0 : i32
    %c0_i32_0 = arith.constant 0 : i32
    %c0_i32_1 = arith.constant 0 : i32
    return %c0_i32, %c0_i32_0 : i32, i32
  }
  func.func @transform_8(%arg0: i32) -> (i32, i32) {
    %c0_i32 = arith.constant 0 : i32
    %c0_i32_0 = arith.constant 0 : i32
    %c0_i32_1 = arith.constant 0 : i32
    return %c0_i32, %c0_i32_0 : i32, i32
  }
  func.func @transform_9(%arg0: i32) -> (i32, i32) {
    %c0_i32 = arith.constant 0 : i32
    %c0_i32_0 = arith.constant 0 : i32
    %c0_i32_1 = arith.constant 0 : i32
    return %c0_i32, %c0_i32_0 : i32, i32
  }
  func.func @transform_10(%arg0: i32) -> (i32, i32) {
    %c0_i32 = arith.constant 0 : i32
    %c0_i32_0 = arith.constant 0 : i32
    %c0_i32_1 = arith.constant 0 : i32
    return %c0_i32, %c0_i32_0 : i32, i32
  }
  func.func @transform_11(%arg0: i32) -> (i32, i32) {
    %c0_i32 = arith.constant 0 : i32
    %c0_i32_0 = arith.constant 0 : i32
    return %arg0, %c0_i32 : i32, i32
  }
}

module attributes {stable_mosaic.version = 11 : i64} {
  func.func @_qnet_duel_kernel(%arg0: i32, %arg1: memref<8x16xbf16, #tpu.memory_space<vmem>>, %arg2: memref<16x128xbf16, #tpu.memory_space<vmem>>, %arg3: memref<1x128xf32, #tpu.memory_space<vmem>>, %arg4: memref<128x128xbf16, #tpu.memory_space<vmem>>, %arg5: memref<1x128xf32, #tpu.memory_space<vmem>>, %arg6: memref<128x256xbf16, #tpu.memory_space<vmem>>, %arg7: memref<1x256xf32, #tpu.memory_space<vmem>>, %arg8: memref<128x128xbf16, #tpu.memory_space<vmem>>, %arg9: memref<1x128xf32, #tpu.memory_space<vmem>>, %arg10: memref<128x128xbf16, #tpu.memory_space<vmem>>, %arg11: memref<1x128xf32, #tpu.memory_space<vmem>>, %arg12: memref<8x128xbf16, #tpu.memory_space<vmem>>) attributes {dimension_semantics = [#tpu.dimension_semantics<parallel>], iteration_bounds = array<i64: 1>, scalar_prefetch = 0 : i64, scratch_operands = 0 : i64, tpu.core_type = #tpu.core_type<tc>, window_params = [{transform_indices = @transform_0, window_bounds = array<i64: 8, 16>}, {pipeline_mode = #tpu.pipeline_mode<synchronous>, transform_indices = @transform_1, window_bounds = array<i64: 16, 128>}, {pipeline_mode = #tpu.pipeline_mode<synchronous>, transform_indices = @transform_2, window_bounds = array<i64: 1, 128>}, {pipeline_mode = #tpu.pipeline_mode<synchronous>, transform_indices = @transform_3, window_bounds = array<i64: 128, 128>}, {pipeline_mode = #tpu.pipeline_mode<synchronous>, transform_indices = @transform_4, window_bounds = array<i64: 1, 128>}, {pipeline_mode = #tpu.pipeline_mode<synchronous>, transform_indices = @transform_5, window_bounds = array<i64: 128, 256>}, {pipeline_mode = #tpu.pipeline_mode<synchronous>, transform_indices = @transform_6, window_bounds = array<i64: 1, 256>}, {pipeline_mode = #tpu.pipeline_mode<synchronous>, transform_indices = @transform_7, window_bounds = array<i64: 128, 128>}, {pipeline_mode = #tpu.pipeline_mode<synchronous>, transform_indices = @transform_8, window_bounds = array<i64: 1, 128>}, {pipeline_mode = #tpu.pipeline_mode<synchronous>, transform_indices = @transform_9, window_bounds = array<i64: 128, 128>}, {pipeline_mode = #tpu.pipeline_mode<synchronous>, transform_indices = @transform_10, window_bounds = array<i64: 1, 128>}, {transform_indices = @transform_11, window_bounds = array<i64: 8, 128>}]} {
    %c0 = arith.constant 0 : index
    %c0_0 = arith.constant 0 : index
    %0 = vector.load %arg1[%c0, %c0_0] : memref<8x16xbf16, #tpu.memory_space<vmem>>, vector<8x16xbf16>
    %c0_1 = arith.constant 0 : index
    %c0_2 = arith.constant 0 : index
    %1 = vector.load %arg2[%c0_1, %c0_2] : memref<16x128xbf16, #tpu.memory_space<vmem>>, vector<16x128xbf16>
    %cst = arith.constant dense<0.000000e+00> : vector<8x128xf32>
    %2 = tpu.matmul %0, %1, %cst {dimension_numbers = #tpu.dot_dimension_numbers<[1], [0], [0], [1], [0, 0, 1, 1], [], []>} : vector<8x16xbf16>, vector<16x128xbf16>, vector<8x128xf32> -> vector<8x128xf32>
    %c0_3 = arith.constant 0 : index
    %c0_4 = arith.constant 0 : index
    %3 = vector.load %arg3[%c0_3, %c0_4] : memref<1x128xf32, #tpu.memory_space<vmem>>, vector<1x128xf32>
    %4 = vector.broadcast %3 : vector<1x128xf32> to vector<8x128xf32>
    %5 = arith.addf %2, %4 : vector<8x128xf32>
    %cst_5 = arith.constant 0.000000e+00 : f32
    %6 = vector.broadcast %cst_5 : f32 to vector<8x128xf32>
    %7 = arith.maximumf %5, %6 : vector<8x128xf32>
    %8 = arith.truncf %7 : vector<8x128xf32> to vector<8x128xbf16>
    %c0_6 = arith.constant 0 : index
    %c0_7 = arith.constant 0 : index
    %9 = vector.load %arg4[%c0_6, %c0_7] : memref<128x128xbf16, #tpu.memory_space<vmem>>, vector<128x128xbf16>
    %cst_8 = arith.constant dense<0.000000e+00> : vector<8x128xf32>
    %10 = tpu.matmul %8, %9, %cst_8 {dimension_numbers = #tpu.dot_dimension_numbers<[1], [0], [0], [1], [0, 0, 1, 1], [], []>} : vector<8x128xbf16>, vector<128x128xbf16>, vector<8x128xf32> -> vector<8x128xf32>
    %c0_9 = arith.constant 0 : index
    %c0_10 = arith.constant 0 : index
    %11 = vector.load %arg5[%c0_9, %c0_10] : memref<1x128xf32, #tpu.memory_space<vmem>>, vector<1x128xf32>
    %12 = vector.broadcast %11 : vector<1x128xf32> to vector<8x128xf32>
    %13 = arith.addf %10, %12 : vector<8x128xf32>
    %14 = arith.truncf %13 : vector<8x128xf32> to vector<8x128xbf16>
    %c0_11 = arith.constant 0 : index
    %c0_12 = arith.constant 0 : index
    %15 = vector.load %arg6[%c0_11, %c0_12] : memref<128x256xbf16, #tpu.memory_space<vmem>>, vector<128x256xbf16>
    %cst_13 = arith.constant dense<0.000000e+00> : vector<8x256xf32>
    %16 = tpu.matmul %14, %15, %cst_13 {dimension_numbers = #tpu.dot_dimension_numbers<[1], [0], [0], [1], [0, 0, 1, 1], [], []>} : vector<8x128xbf16>, vector<128x256xbf16>, vector<8x256xf32> -> vector<8x256xf32>
    %c0_14 = arith.constant 0 : index
    %c0_15 = arith.constant 0 : index
    %17 = vector.load %arg7[%c0_14, %c0_15] : memref<1x256xf32, #tpu.memory_space<vmem>>, vector<1x256xf32>
    %18 = vector.broadcast %17 : vector<1x256xf32> to vector<8x256xf32>
    %19 = arith.addf %16, %18 : vector<8x256xf32>
    %cst_16 = arith.constant 3.000000e+00 : f32
    %20 = vector.broadcast %cst_16 : f32 to vector<8x256xf32>
    %21 = arith.addf %19, %20 : vector<8x256xf32>
    %cst_17 = arith.constant 0.000000e+00 : f32
    %cst_18 = arith.constant 6.000000e+00 : f32
    %22 = vector.broadcast %cst_17 : f32 to vector<8x256xf32>
    %23 = arith.maximumf %22, %21 : vector<8x256xf32>
    %24 = vector.broadcast %cst_18 : f32 to vector<8x256xf32>
    %25 = arith.minimumf %24, %23 : vector<8x256xf32>
    %26 = arith.mulf %19, %25 : vector<8x256xf32>
    %cst_19 = arith.constant 0.166666672 : f32
    %27 = vector.broadcast %cst_19 : f32 to vector<8x256xf32>
    %28 = arith.mulf %26, %27 : vector<8x256xf32>
    %29 = arith.truncf %28 : vector<8x256xf32> to vector<8x256xbf16>
    %30 = vector.extract_strided_slice %29 {offsets = [0, 0], sizes = [8, 128], strides = [1, 1]} : vector<8x256xbf16> to vector<8x128xbf16>
    %31 = vector.extract_strided_slice %29 {offsets = [0, 128], sizes = [8, 128], strides = [1, 1]} : vector<8x256xbf16> to vector<8x128xbf16>
    %c0_20 = arith.constant 0 : index
    %c0_21 = arith.constant 0 : index
    %32 = vector.load %arg8[%c0_20, %c0_21] : memref<128x128xbf16, #tpu.memory_space<vmem>>, vector<128x128xbf16>
    %cst_22 = arith.constant dense<0.000000e+00> : vector<8x128xf32>
    %33 = tpu.matmul %30, %32, %cst_22 {dimension_numbers = #tpu.dot_dimension_numbers<[1], [0], [0], [1], [0, 0, 1, 1], [], []>} : vector<8x128xbf16>, vector<128x128xbf16>, vector<8x128xf32> -> vector<8x128xf32>
    %c0_23 = arith.constant 0 : index
    %c0_24 = arith.constant 0 : index
    %34 = vector.load %arg9[%c0_23, %c0_24] : memref<1x128xf32, #tpu.memory_space<vmem>>, vector<1x128xf32>
    %35 = vector.broadcast %34 : vector<1x128xf32> to vector<8x128xf32>
    %36 = arith.addf %33, %35 : vector<8x128xf32>
    %c0_25 = arith.constant 0 : index
    %c0_26 = arith.constant 0 : index
    %37 = vector.load %arg10[%c0_25, %c0_26] : memref<128x128xbf16, #tpu.memory_space<vmem>>, vector<128x128xbf16>
    %cst_27 = arith.constant dense<0.000000e+00> : vector<8x128xf32>
    %38 = tpu.matmul %31, %37, %cst_27 {dimension_numbers = #tpu.dot_dimension_numbers<[1], [0], [0], [1], [0, 0, 1, 1], [], []>} : vector<8x128xbf16>, vector<128x128xbf16>, vector<8x128xf32> -> vector<8x128xf32>
    %c0_28 = arith.constant 0 : index
    %c0_29 = arith.constant 0 : index
    %39 = vector.load %arg11[%c0_28, %c0_29] : memref<1x128xf32, #tpu.memory_space<vmem>>, vector<1x128xf32>
    %40 = vector.broadcast %39 : vector<1x128xf32> to vector<8x128xf32>
    %41 = arith.addf %38, %40 : vector<8x128xf32>
    %cst_30 = arith.constant dense<0.000000e+00> : vector<8xf32>
    %42 = vector.multi_reduction <add>, %41, %cst_30 [1] : vector<8x128xf32> to vector<8xf32>
    %43 = vector.shape_cast %42 : vector<8xf32> to vector<8x1xf32>
    %cst_31 = arith.constant dense<0.000000e+00> : vector<8xf32>
    %44 = vector.multi_reduction <add>, %36, %cst_31 [1] : vector<8x128xf32> to vector<8xf32>
    %45 = vector.shape_cast %44 : vector<8xf32> to vector<8x1xf32>
    %cst_32 = arith.constant 2.500000e-01 : f32
    %46 = vector.broadcast %cst_32 : f32 to vector<8x1xf32>
    %47 = arith.mulf %45, %46 : vector<8x1xf32>
    %48 = vector.broadcast %47 : vector<8x1xf32> to vector<8x128xf32>
    %49 = arith.subf %36, %48 : vector<8x128xf32>
    %50 = vector.broadcast %43 : vector<8x1xf32> to vector<8x128xf32>
    %51 = arith.addf %49, %50 : vector<8x128xf32>
    %52 = arith.truncf %51 : vector<8x128xf32> to vector<8x128xbf16>
    %c0_33 = arith.constant 0 : index
    %c0_34 = arith.constant 0 : index
    %53 = vector.load %arg12[%c0_33, %c0_34] : memref<8x128xbf16, #tpu.memory_space<vmem>>, vector<8x128xbf16>
    tpu.vector_store %arg12[%c0_33, %c0_34], %52 {strides = array<i32>} : memref<8x128xbf16, #tpu.memory_space<vmem>>, vector<8x128xbf16>,
    return
  }
  func.func @transform_0(%arg0: i32) -> (i32, i32) {
    %c0_i32 = arith.constant 0 : i32
    %c0_i32_0 = arith.constant 0 : i32
    return %arg0, %c0_i32 : i32, i32
  }
  func.func @transform_1(%arg0: i32) -> (i32, i32) {
    %c0_i32 = arith.constant 0 : i32
    %c0_i32_0 = arith.constant 0 : i32
    %c0_i32_1 = arith.constant 0 : i32
    return %c0_i32, %c0_i32_0 : i32, i32
  }
  func.func @transform_2(%arg0: i32) -> (i32, i32) {
    %c0_i32 = arith.constant 0 : i32
    %c0_i32_0 = arith.constant 0 : i32
    %c0_i32_1 = arith.constant 0 : i32
    return %c0_i32, %c0_i32_0 : i32, i32
  }
  func.func @transform_3(%arg0: i32) -> (i32, i32) {
    %c0_i32 = arith.constant 0 : i32
    %c0_i32_0 = arith.constant 0 : i32
    %c0_i32_1 = arith.constant 0 : i32
    return %c0_i32, %c0_i32_0 : i32, i32
  }
  func.func @transform_4(%arg0: i32) -> (i32, i32) {
    %c0_i32 = arith.constant 0 : i32
    %c0_i32_0 = arith.constant 0 : i32
    %c0_i32_1 = arith.constant 0 : i32
    return %c0_i32, %c0_i32_0 : i32, i32
  }
  func.func @transform_5(%arg0: i32) -> (i32, i32) {
    %c0_i32 = arith.constant 0 : i32
    %c0_i32_0 = arith.constant 0 : i32
    %c0_i32_1 = arith.constant 0 : i32
    return %c0_i32, %c0_i32_0 : i32, i32
  }
  func.func @transform_6(%arg0: i32) -> (i32, i32) {
    %c0_i32 = arith.constant 0 : i32
    %c0_i32_0 = arith.constant 0 : i32
    %c0_i32_1 = arith.constant 0 : i32
    return %c0_i32, %c0_i32_0 : i32, i32
  }
  func.func @transform_7(%arg0: i32) -> (i32, i32) {
    %c0_i32 = arith.constant 0 : i32
    %c0_i32_0 = arith.constant 0 : i32
    %c0_i32_1 = arith.constant 0 : i32
    return %c0_i32, %c0_i32_0 : i32, i32
  }
  func.func @transform_8(%arg0: i32) -> (i32, i32) {
    %c0_i32 = arith.constant 0 : i32
    %c0_i32_0 = arith.constant 0 : i32
    %c0_i32_1 = arith.constant 0 : i32
    return %c0_i32, %c0_i32_0 : i32, i32
  }
  func.func @transform_9(%arg0: i32) -> (i32, i32) {
    %c0_i32 = arith.constant 0 : i32
    %c0_i32_0 = arith.constant 0 : i32
    %c0_i32_1 = arith.constant 0 : i32
    return %c0_i32, %c0_i32_0 : i32, i32
  }
  func.func @transform_10(%arg0: i32) -> (i32, i32) {
    %c0_i32 = arith.constant 0 : i32
    %c0_i32_0 = arith.constant 0 : i32
    %c0_i32_1 = arith.constant 0 : i32
    return %c0_i32, %c0_i32_0 : i32, i32
  }
  func.func @transform_11(%arg0: i32) -> (i32, i32) {
    %c0_i32 = arith.constant 0 : i32
    %c0_i32_0 = arith.constant 0 : i32
    return %arg0, %c0_i32 : i32, i32
  }
}

</mosaic_0001>

<llo_original>
// kernel: tpu_custom_call.1
$region0: #{tpu_custom_call.1}
  #allocation0 [shape = 'u32[]', space=smem, size = 0x4, offset = 0x4, fixed_abs, tag = 'smem constant byte address 0x4 - core index']
  #allocation1 [shape = 'u32[144,128]{1,0:T(1,128)}', space=vmem, size = 0x12000, scoped, tag = 'internal scratch']
  %s0 = inlined_call_operand.hbm [shape: bf16[8,16], index: 0, kind: input, shape index: {}]
  %s1 = inlined_call_operand.hbm [shape: bf16[16,128], index: 1, kind: input, shape index: {}]
  %s2 = inlined_call_operand.vmem [shape: f32[1,128], index: 2, kind: input, shape index: {}]
  %s3 = inlined_call_operand.hbm [shape: bf16[128,128], index: 3, kind: input, shape index: {}]
  %s4 = inlined_call_operand.vmem [shape: f32[1,128], index: 4, kind: input, shape index: {}]
  %s5 = inlined_call_operand.hbm [shape: bf16[128,256], index: 5, kind: input, shape index: {}]
  %s6 = inlined_call_operand.vmem [shape: f32[1,256], index: 6, kind: input, shape index: {}]
  %s7 = inlined_call_operand.hbm [shape: bf16[128,128], index: 7, kind: input, shape index: {}]
  %s8 = inlined_call_operand.vmem [shape: f32[1,128], index: 8, kind: input, shape index: {}]
  %s9 = inlined_call_operand.hbm [shape: bf16[128,128], index: 9, kind: input, shape index: {}]
  %s10 = inlined_call_operand.vmem [shape: f32[1,128], index: 10, kind: input, shape index: {}]
  %s11 = inlined_call_operand.hbm [shape: bf16[8,128], index: 11, kind: output, shape index: {}]
  %s12 = sld [smem:[#allocation0]]
  $region78: #{tpu_custom_call.1} parent=0
    _
  %s14 = ssub.s32 1, %s12
  %s15 = scalar_select 0, %s14, %s12
  $region1: #{tpu_custom_call.1} parent=0
    #allocation2 [shape = 'u8[2048]{0}', space=vmem, size = 0x800, scoped, tag = 'input window, operand 0, single buffered']
    #allocation3 [shape = 's32[1]{0}', space=sflag, size = 0x4, scoped, tag = 'scoped memory for tpu_custom_call.1']
    #allocation4 [shape = 's32[1]{0}', space=sflag, size = 0x4, scoped, tag = 'scoped memory for tpu_custom_call.1']
    #allocation5 [shape = 'u8[4096]{0}', space=vmem, size = 0x1000, scoped, tag = 'input window, operand 1, single buffered']
    #allocation6 [shape = 's32[1]{0}', space=sflag, size = 0x4, scoped, tag = 'scoped memory for tpu_custom_call.1']
    #allocation7 [shape = 'u8[32768]{0}', space=vmem, size = 0x8000, scoped, tag = 'input window, operand 3, single buffered']
    #allocation8 [shape = 'u8[65536]{0}', space=vmem, size = 0x10000, scoped, tag = 'input window, operand 5, single buffered']
    #allocation9 [shape = 's32[1]{0}', space=sflag, size = 0x4, scoped, tag = 'scoped memory for tpu_custom_call.1']
    #allocation10 [shape = 'u8[32768]{0}', space=vmem, size = 0x8000, scoped, tag = 'input window, operand 7, single buffered']
    #allocation11 [shape = 'u8[32768]{0}', space=vmem, size = 0x8000, scoped, tag = 'input window, operand 9, single buffered']
    #allocation12 [shape = 's32[1]{0}', space=sflag, size = 0x4, scoped, tag = 'scoped memory for tpu_custom_call.1']
    #allocation13 [shape = 'u8[2048]{0}', space=vmem, size = 0x800, scoped, tag = 'output window, operand 0, single buffered']
    %16 = vsyncpa [#allocation3], 0
    %17 = vsyncpa [#allocation6], 0
    %18 = vsyncpa [#allocation9], 0
    %19 = vsyncpa [#allocation12], 0
    %20 = vsyncpa [#allocation4], 0
    // Predicated region
    $region2: #{tpu_custom_call.1} parent=1 // pred_check
      _
    $region3: #{tpu_custom_call.1} parent=1 // pred_check_branch
      %22 = sbr.rel (0) target = $region5
    $region4: #{tpu_custom_call.1} parent=1 // pred_region
      %s24 = ssub.s32 64, 64
      %25 = vsyncadd [#allocation3], %s24
      %s27 = sshll.u32 [#allocation2], 4
      %s28 = int_to_ptr.vmem [resolvable:$true] %s27
      %30 = dma.hbm_to_vmem [thread:$0]  %s0, 64, %s28, [#allocation3]
    $region5: #{tpu_custom_call.1} parent=1 // pred_fallthru
      _
    // Predicated region
    $region6: #{tpu_custom_call.1} parent=1 // pred_check
      _
    $region7: #{tpu_custom_call.1} parent=1 // pred_check_branch
      %32 = sbr.rel (0) target = $region9
    $region8: #{tpu_custom_call.1} parent=1 // pred_region
      %s34 = ssub.s32 128, 128
      %35 = vsyncadd [#allocation6], %s34
      %s36 = sshll.u32 [#allocation5], 4
      %s37 = int_to_ptr.vmem [resolvable:$true] %s36
      %42 = dma.hbm_to_vmem [thread:$0]  %s1, 128, %s37, [#allocation6], 64, 64, 4
    $region9: #{tpu_custom_call.1} parent=1 // pred_fallthru
      _
    // Predicated region
    $region10: #{tpu_custom_call.1} parent=1 // pred_check
      _
    $region11: #{tpu_custom_call.1} parent=1 // pred_check_branch
      %44 = sbr.rel (0) target = $region13
    $region12: #{tpu_custom_call.1} parent=1 // pred_region
      _
    $region13: #{tpu_custom_call.1} parent=1 // pred_fallthru
      _
    // Predicated region
    $region14: #{tpu_custom_call.1} parent=1 // pred_check
      _
    $region15: #{tpu_custom_call.1} parent=1 // pred_check_branch
      %46 = sbr.rel (0) target = $region17
    $region16: #{tpu_custom_call.1} parent=1 // pred_region
      %s48 = ssub.s32 1024, 1024
      %49 = vsyncadd [#allocation6], %s48
      %s50 = sshll.u32 [#allocation7], 4
      %s51 = int_to_ptr.vmem [resolvable:$true] %s50
      %56 = dma.hbm_to_vmem [thread:$0]  %s3, 1024, %s51, [#allocation6], 64, 64, 4
    $region17: #{tpu_custom_call.1} parent=1 // pred_fallthru
      _
    // Predicated region
    $region18: #{tpu_custom_call.1} parent=1 // pred_check
      _
    $region19: #{tpu_custom_call.1} parent=1 // pred_check_branch
      %58 = sbr.rel (0) target = $region21
    $region20: #{tpu_custom_call.1} parent=1 // pred_region
      _
    $region21: #{tpu_custom_call.1} parent=1 // pred_fallthru
      _
    // Predicated region
    $region22: #{tpu_custom_call.1} parent=1 // pred_check
      _
    $region23: #{tpu_custom_call.1} parent=1 // pred_check_branch
      %60 = sbr.rel (0) target = $region25
    $region24: #{tpu_custom_call.1} parent=1 // pred_region
      %s62 = ssub.s32 2048, 2048
      %63 = vsyncadd [#allocation9], %s62
      %s64 = sshll.u32 [#allocation8], 4
      %s65 = int_to_ptr.vmem [resolvable:$true] %s64
      %70 = dma.hbm_to_vmem [thread:$0]  %s5, 2048, %s65, [#allocation9], 128, 128, 8
    $region25: #{tpu_custom_call.1} parent=1 // pred_fallthru
      _
    // Predicated region
    $region26: #{tpu_custom_call.1} parent=1 // pred_check
      _
    $region27: #{tpu_custom_call.1} parent=1 // pred_check_branch
      %72 = sbr.rel (0) target = $region29
    $region28: #{tpu_custom_call.1} parent=1 // pred_region
      _
    $region29: #{tpu_custom_call.1} parent=1 // pred_fallthru
      _
    // Predicated region
    $region30: #{tpu_custom_call.1} parent=1 // pred_check
      _
    $region31: #{tpu_custom_call.1} parent=1 // pred_check_branch
      %74 = sbr.rel (0) target = $region33
    $region32: #{tpu_custom_call.1} parent=1 // pred_region
      %s76 = ssub.s32 1024, 1024
      %77 = vsyncadd [#allocation9], %s76
      %s78 = sshll.u32 [#allocation10], 4
      %s79 = int_to_ptr.vmem [resolvable:$true] %s78
      %84 = dma.hbm_to_vmem [thread:$0]  %s7, 1024, %s79, [#allocation9], 64, 64, 4
    $region33: #{tpu_custom_call.1} parent=1 // pred_fallthru
      _
    // Predicated region
    $region34: #{tpu_custom_call.1} parent=1 // pred_check
      _
    $region35: #{tpu_custom_call.1} parent=1 // pred_check_branch
      %86 = sbr.rel (0) target = $region37
    $region36: #{tpu_custom_call.1} parent=1 // pred_region
      _
    $region37: #{tpu_custom_call.1} parent=1 // pred_fallthru
      _
    // Predicated region
    $region38: #{tpu_custom_call.1} parent=1 // pred_check
      _
    $region39: #{tpu_custom_call.1} parent=1 // pred_check_branch
      %88 = sbr.rel (0) target = $region41
    $region40: #{tpu_custom_call.1} parent=1 // pred_region
      %s90 = ssub.s32 1024, 1024
      %91 = vsyncadd [#allocation12], %s90
      %s92 = sshll.u32 [#allocation11], 4
      %s93 = int_to_ptr.vmem [resolvable:$true] %s92
      %98 = dma.hbm_to_vmem [thread:$0]  %s9, 1024, %s93, [#allocation12], 64, 64, 4
    $region41: #{tpu_custom_call.1} parent=1 // pred_fallthru
      _
    // Predicated region
    $region42: #{tpu_custom_call.1} parent=1 // pred_check
      _
    $region43: #{tpu_custom_call.1} parent=1 // pred_check_branch
      %100 = sbr.rel (0) target = $region45
    $region44: #{tpu_custom_call.1} parent=1 // pred_region
      _
    $region45: #{tpu_custom_call.1} parent=1 // pred_fallthru
      _
    // Predicated region
    $region46: #{tpu_custom_call.1} parent=1 // pred_check
      _
    $region47: #{tpu_custom_call.1} parent=1 // pred_check_branch
      %102 = sbr.rel (0) target = $region49
    $region48: #{tpu_custom_call.1} parent=1 // pred_region
      %103 = dma.done [#allocation3], 64
    $region49: #{tpu_custom_call.1} parent=1 // pred_fallthru
      _
    // Predicated region
    $region50: #{tpu_custom_call.1} parent=1 // pred_check
      _
    $region51: #{tpu_custom_call.1} parent=1 // pred_check_branch
      %105 = sbr.rel (0) target = $region53
    $region52: #{tpu_custom_call.1} parent=1 // pred_region
      %106 = dma.done [#allocation6], 128
    $region53: #{tpu_custom_call.1} parent=1 // pred_fallthru
      _
    // Predicated region
    $region54: #{tpu_custom_call.1} parent=1 // pred_check
      _
    $region55: #{tpu_custom_call.1} parent=1 // pred_check_branch
      %108 = sbr.rel (0) target = $region57
    $region56: #{tpu_custom_call.1} parent=1 // pred_region
      %109 = dma.done [#allocation6], 1024
    $region57: #{tpu_custom_call.1} parent=1 // pred_fallthru
      _
    // Predicated region
    $region58: #{tpu_custom_call.1} parent=1 // pred_check
      _
    $region59: #{tpu_custom_call.1} parent=1 // pred_check_branch
      %111 = sbr.rel (0) target = $region61
    $region60: #{tpu_custom_call.1} parent=1 // pred_region
      %112 = dma.done [#allocation9], 2048
    $region61: #{tpu_custom_call.1} parent=1 // pred_fallthru
      _
    // Predicated region
    $region62: #{tpu_custom_call.1} parent=1 // pred_check
      _
    $region63: #{tpu_custom_call.1} parent=1 // pred_check_branch
      %114 = sbr.rel (0) target = $region65
    $region64: #{tpu_custom_call.1} parent=1 // pred_region
      %115 = dma.done [#allocation9], 1024
    $region65: #{tpu_custom_call.1} parent=1 // pred_fallthru
      _
    // Predicated region
    $region66: #{tpu_custom_call.1} parent=1 // pred_check
      _
    $region67: #{tpu_custom_call.1} parent=1 // pred_check_branch
      %117 = sbr.rel (0) target = $region69
    $region68: #{tpu_custom_call.1} parent=1 // pred_region
      %118 = dma.done [#allocation12], 1024
    $region69: #{tpu_custom_call.1} parent=1 // pred_fallthru
      _
    %v120 = vld [vmem:[#allocation2] sm:$0xf]
    %v121 = vld [vmem:[#allocation5] sm:$0xf]
    %v122 = vld [vmem:[#allocation5 + $0x4] sm:$0xf]
    %v123 = vld [vmem:[%s2] sm:$0x1]
    %v125 = vlaneseq
    %v126 = vshrl.u32 %v125, 7
    %v127 = vsub.s32 0, %v126
    %v128 = vrot.slane %v123, %v127
    %v132 = vunpack.c.l.b16 %v121
    %v133 = vunpack.c.l.b16 %v122
    %v134 = vpack.c.b16 %v133, %v132
    %vm136 = vcmask 130048
    %v138 = vsel %vm136, %v120, 0
    %140 = vmatprep.subr.bf16.mxu0 0
    %141 = vmatpush1.bf16.msra.mxu0 %v134
    %142 = vmatprep.subr.bf16.mxu0 0
    %143 = vmatpush1.bf16.msra.mxu0 0
    %144 = vmatprep.subr.bf16.mxu0 0
    %145 = vmatpush1.bf16.msra.mxu0 0
    %146 = vmatprep.subr.bf16.mxu0 0
    %147 = vmatpush1.bf16.msra.mxu0 0
    %148 = vmatprep.subr.bf16.mxu0 0
    %149 = vmatpush1.bf16.msra.mxu0 0
    %150 = vmatprep.subr.bf16.mxu0 0
    %151 = vmatpush1.bf16.msra.mxu0 0
    %152 = vmatprep.subr.bf16.mxu0 0
    %153 = vmatpush1.bf16.msra.mxu0 0
    %154 = vmatprep.subr.bf16.mxu0 0
    %155 = vmatpush1.bf16.msra.mxu0 0
    %156 = vmatprep.subr.bf16.mxu0 0
    %157 = vmatpush1.bf16.msra.mxu0 0
    %158 = vmatprep.subr.bf16.mxu0 0
    %159 = vmatpush1.bf16.msra.mxu0 0
    %160 = vmatprep.subr.bf16.mxu0 0
    %161 = vmatpush1.bf16.msra.mxu0 0
    %162 = vmatprep.subr.bf16.mxu0 0
    %163 = vmatpush1.bf16.msra.mxu0 0
    %164 = vmatprep.subr.bf16.mxu0 0
    %165 = vmatpush1.bf16.msra.mxu0 0
    %166 = vmatprep.subr.bf16.mxu0 0
    %167 = vmatpush1.bf16.msra.mxu0 0
    %168 = vmatprep.subr.bf16.mxu0 0
    %169 = vmatpush1.bf16.msra.mxu0 0
    %170 = vmatprep.subr.bf16.mxu0 0
    %171 = vmatpush1.bf16.msra.mxu0 0
    %172 = vmatprep.mubr.bf16.mxu0 0
    %173 = vmatmul.mubr.bf16.gmra.mrb[0].mxu0 %v138
    %v174 = vpop.f32.mrb[0].mxu0
    %v175 = vadd.f32 %v128, %v174
    %v176 = vpop.f32.mrb[0].mxu0
    %v177 = vpop.f32.mrb[0].mxu0
    %v178 = vpop.f32.mrb[0].mxu0
    %179 = vdwg.mxu0
    %v180 = vmax.f32 %v175, 0.0
    %v181 = vpack.c.bf16 %v180, %v180
    %v182 = vld [vmem:[#allocation7] sm:$0xf]
    %v183 = vld [vmem:[#allocation7 + $0x4] sm:$0xf]
    %v184 = vld [vmem:[#allocation7 + $0x8] sm:$0xf]
    %v185 = vld [vmem:[#allocation7 + $0xc] sm:$0xf]
    %v186 = vld [vmem:[#allocation7 + $0x10] sm:$0xf]
    %v187 = vld [vmem:[#allocation7 + $0x14] sm:$0xf]
    %v188 = vld [vmem:[#allocation7 + $0x18] sm:$0xf]
    %v189 = vld [vmem:[#allocation7 + $0x1c] sm:$0xf]
    %v190 = vld [vmem:[#allocation7 + $0x20] sm:$0xf]
    %v191 = vld [vmem:[#allocation7 + $0x24] sm:$0xf]
    %v192 = vld [vmem:[#allocation7 + $0x28] sm:$0xf]
    %v193 = vld [vmem:[#allocation7 + $0x2c] sm:$0xf]
    %v194 = vld [vmem:[#allocation7 + $0x30] sm:$0xf]
    %v195 = vld [vmem:[#allocation7 + $0x34] sm:$0xf]
    %v196 = vld [vmem:[#allocation7 + $0x38] sm:$0xf]
    %v197 = vld [vmem:[#allocation7 + $0x3c] sm:$0xf]
    %v198 = vld [vmem:[%s4] sm:$0x1]
    %v200 = vlaneseq
    %v201 = vshrl.u32 %v200, 7
    %v202 = vsub.s32 0, %v201
    %v203 = vrot.slane %v198, %v202
    %v221 = vunpack.c.l.b16 %v182
    %v222 = vunpack.c.l.b16 %v183
    %v223 = vunpack.c.l.b16 %v184
    %v224 = vunpack.c.l.b16 %v185
    %v225 = vunpack.c.l.b16 %v186
    %v226 = vunpack.c.l.b16 %v187
    %v227 = vunpack.c.l.b16 %v188
    %v228 = vunpack.c.l.b16 %v189
    %v229 = vunpack.c.l.b16 %v190
    %v230 = vunpack.c.l.b16 %v191
    %v231 = vunpack.c.l.b16 %v192
    %v232 = vunpack.c.l.b16 %v193
    %v233 = vunpack.c.l.b16 %v194
    %v234 = vunpack.c.l.b16 %v195
    %v235 = vunpack.c.l.b16 %v196
    %v236 = vunpack.c.l.b16 %v197
    %v237 = vpack.c.b16 %v222, %v221
    %v238 = vpack.c.b16 %v224, %v223
    %v239 = vpack.c.b16 %v226, %v225
    %v240 = vpack.c.b16 %v228, %v227
    %v241 = vpack.c.b16 %v230, %v229
    %v242 = vpack.c.b16 %v232, %v231
    %v243 = vpack.c.b16 %v234, %v233
    %v244 = vpack.c.b16 %v236, %v235
    %253 = vmatprep.subr.bf16.mxu0 0
    %254 = vmatpush1.bf16.msra.mxu0 %v237
    %255 = vmatprep.subr.bf16.mxu0 0
    %256 = vmatpush1.bf16.msra.mxu0 %v238
    %257 = vmatprep.subr.bf16.mxu0 0
    %258 = vmatpush1.bf16.msra.mxu0 %v239
    %259 = vmatprep.subr.bf16.mxu0 0
    %260 = vmatpush1.bf16.msra.mxu0 %v240
    %261 = vmatprep.subr.bf16.mxu0 0
    %262 = vmatpush1.bf16.msra.mxu0 %v241
    %263 = vmatprep.subr.bf16.mxu0 0
    %264 = vmatpush1.bf16.msra.mxu0 %v242
    %265 = vmatprep.subr.bf16.mxu0 0
    %266 = vmatpush1.bf16.msra.mxu0 %v243
    %267 = vmatprep.subr.bf16.mxu0 0
    %268 = vmatpush1.bf16.msra.mxu0 %v244
    %269 = vmatprep.subr.bf16.mxu0 0
    %270 = vmatpush1.bf16.msra.mxu0 0
    %271 = vmatprep.subr.bf16.mxu0 0
    %272 = vmatpush1.bf16.msra.mxu0 0
    %273 = vmatprep.subr.bf16.mxu0 0
    %274 = vmatpush1.bf16.msra.mxu0 0
    %275 = vmatprep.subr.bf16.mxu0 0
    %276 = vmatpush1.bf16.msra.mxu0 0
    %277 = vmatprep.subr.bf16.mxu0 0
    %278 = vmatpush1.bf16.msra.mxu0 0
    %279 = vmatprep.subr.bf16.mxu0 0
    %280 = vmatpush1.bf16.msra.mxu0 0
    %281 = vmatprep.subr.bf16.mxu0 0
    %282 = vmatpush1.bf16.msra.mxu0 0
    %283 = vmatprep.subr.bf16.mxu0 0
    %284 = vmatpush1.bf16.msra.mxu0 0
    %285 = vmatprep.mubr.bf16.mxu0 0
    %286 = vmatmul.mubr.bf16.gmra.mrb[0].mxu0 %v181
    %v287 = vpop.f32.mrb[0].mxu0
    %v288 = vadd.f32 %v203, %v287
    %v289 = vpop.f32.mrb[0].mxu0
    %v290 = vpop.f32.mrb[0].mxu0
    %v291 = vpop.f32.mrb[0].mxu0
    %292 = vdwg.mxu0
    %v293 = vpack.c.bf16 %v288, %v288
    %v294 = vld [vmem:[#allocation8] sm:$0xff]
    %v295 = vld [vmem:[#allocation8 + $0x8] sm:$0xff]
    %v296 = vld [vmem:[#allocation8 + $0x10] sm:$0xff]
    %v297 = vld [vmem:[#allocation8 + $0x18] sm:$0xff]
    %v298 = vld [vmem:[#allocation8 + $0x20] sm:$0xff]
    %v299 = vld [vmem:[#allocation8 + $0x28] sm:$0xff]
    %v300 = vld [vmem:[#allocation8 + $0x30] sm:$0xff]
    %v301 = vld [vmem:[#allocation8 + $0x38] sm:$0xff]
    %v302 = vld [vmem:[#allocation8 + $0x40] sm:$0xff]
    %v303 = vld [vmem:[#allocation8 + $0x48] sm:$0xff]
    %v304 = vld [vmem:[#allocation8 + $0x50] sm:$0xff]
    %v305 = vld [vmem:[#allocation8 + $0x58] sm:$0xff]
    %v306 = vld [vmem:[#allocation8 + $0x60] sm:$0xff]
    %v307 = vld [vmem:[#allocation8 + $0x68] sm:$0xff]
    %v308 = vld [vmem:[#allocation8 + $0x70] sm:$0xff]
    %v309 = vld [vmem:[#allocation8 + $0x78] sm:$0xff]
    %v310 = vld [vmem:[%s6] sm:$0x3]
    %v312 = vlaneseq
    %v313 = vshrl.u32 %v312, 7
    %v314 = vsub.s32 0, %v313
    %v315 = vrot.slane %v310, %v314
    %v316 = vlaneseq
    %v317 = vshrl.u32 %v316, 7
    %v318 = vsub.s32 1, %v317
    %v319 = vrot.slane %v310, %v318
    %v338 = vunpack.c.l.b16 %v294
    %v339 = vunpack.c.h.b16 %v294
    %v340 = vunpack.c.l.b16 %v295
    %v341 = vunpack.c.h.b16 %v295
    %v342 = vunpack.c.l.b16 %v296
    %v343 = vunpack.c.h.b16 %v296
    %v344 = vunpack.c.l.b16 %v297
    %v345 = vunpack.c.h.b16 %v297
    %v346 = vunpack.c.l.b16 %v298
    %v347 = vunpack.c.h.b16 %v298
    %v348 = vunpack.c.l.b16 %v299
    %v349 = vunpack.c.h.b16 %v299
    %v350 = vunpack.c.l.b16 %v300
    %v351 = vunpack.c.h.b16 %v300
    %v352 = vunpack.c.l.b16 %v301
    %v353 = vunpack.c.h.b16 %v301
    %v354 = vunpack.c.l.b16 %v302
    %v355 = vunpack.c.h.b16 %v302
    %v356 = vunpack.c.l.b16 %v303
    %v357 = vunpack.c.h.b16 %v303
    %v358 = vunpack.c.l.b16 %v304
    %v359 = vunpack.c.h.b16 %v304
    %v360 = vunpack.c.l.b16 %v305
    %v361 = vunpack.c.h.b16 %v305
    %v362 = vunpack.c.l.b16 %v306
    %v363 = vunpack.c.h.b16 %v306
    %v364 = vunpack.c.l.b16 %v307
    %v365 = vunpack.c.h.b16 %v307
    %v366 = vunpack.c.l.b16 %v308
    %v367 = vunpack.c.h.b16 %v308
    %v368 = vunpack.c.l.b16 %v309
    %v369 = vunpack.c.h.b16 %v309
    %v370 = vpack.c.b16 %v340, %v338
    %v371 = vpack.c.b16 %v341, %v339
    %v372 = vpack.c.b16 %v344, %v342
    %v373 = vpack.c.b16 %v345, %v343
    %v374 = vpack.c.b16 %v348, %v346
    %v375 = vpack.c.b16 %v349, %v347
    %v376 = vpack.c.b16 %v352, %v350
    %v377 = vpack.c.b16 %v353, %v351
    %v378 = vpack.c.b16 %v356, %v354
    %v379 = vpack.c.b16 %v357, %v355
    %v380 = vpack.c.b16 %v360, %v358
    %v381 = vpack.c.b16 %v361, %v359
    %v382 = vpack.c.b16 %v364, %v362
    %v383 = vpack.c.b16 %v365, %v363
    %v384 = vpack.c.b16 %v368, %v366
    %v385 = vpack.c.b16 %v369, %v367
    %402 = vmatprep.subr.bf16.mxu0 %v371
    %403 = vmatpush1.bf16.msra.mxu0 %v370
    %404 = vmatprep.subr.bf16.mxu0 %v373
    %405 = vmatpush1.bf16.msra.mxu0 %v372
    %406 = vmatprep.subr.bf16.mxu0 %v375
    %407 = vmatpush1.bf16.msra.mxu0 %v374
    %408 = vmatprep.subr.bf16.mxu0 %v377
    %409 = vmatpush1.bf16.msra.mxu0 %v376
    %410 = vmatprep.subr.bf16.mxu0 %v379
    %411 = vmatpush1.bf16.msra.mxu0 %v378
    %412 = vmatprep.subr.bf16.mxu0 %v381
    %413 = vmatpush1.bf16.msra.mxu0 %v380
    %414 = vmatprep.subr.bf16.mxu0 %v383
    %415 = vmatpush1.bf16.msra.mxu0 %v382
    %416 = vmatprep.subr.bf16.mxu0 %v385
    %417 = vmatpush1.bf16.msra.mxu0 %v384
    %418 = vmatprep.subr.bf16.mxu0 0
    %419 = vmatpush1.bf16.msra.mxu0 0
    %420 = vmatprep.subr.bf16.mxu0 0
    %421 = vmatpush1.bf16.msra.mxu0 0
    %422 = vmatprep.subr.bf16.mxu0 0
    %423 = vmatpush1.bf16.msra.mxu0 0
    %424 = vmatprep.subr.bf16.mxu0 0
    %425 = vmatpush1.bf16.msra.mxu0 0
    %426 = vmatprep.subr.bf16.mxu0 0
    %427 = vmatpush1.bf16.msra.mxu0 0
    %428 = vmatprep.subr.bf16.mxu0 0
    %429 = vmatpush1.bf16.msra.mxu0 0
    %430 = vmatprep.subr.bf16.mxu0 0
    %431 = vmatpush1.bf16.msra.mxu0 0
    %432 = vmatprep.subr.bf16.mxu0 0
    %433 = vmatpush1.bf16.msra.mxu0 0
    %434 = vmatprep.mubr.bf16.mxu0 0
    %435 = vmatmul.mubr.bf16.gmra.mrb[0].mxu0 %v293
    %v436 = vpop.f32.mrb[0].mxu0
    %v437 = vadd.f32 %v315, %v436
    %v438 = vpop.f32.mrb[0].mxu0
    %v439 = vadd.f32 %v319, %v438
    %v440 = vpop.f32.mrb[0].mxu0
    %v441 = vpop.f32.mrb[0].mxu0
    %442 = vdwg.mxu0
    %v443 = vadd.f32 %v437, 3.0
    %v444 = vadd.f32 %v439, 3.0
    %v445 = vmax.f32 %v443, 0.0
    %v446 = vmax.f32 %v444, 0.0
    %v447 = vmin.f32 %v445, 6.0
    %v448 = vmin.f32 %v446, 6.0
    %v449 = vmul.f32 %v437, %v447
    %v450 = vmul.f32 %v439, %v448
    %v451 = vmul.f32 %v449, 0.16666667
    %v452 = vmul.f32 %v450, 0.16666667
    %v453 = vpack.c.bf16 %v451, %v451
    %v454 = vpack.c.bf16 %v452, %v452
    %v455 = vld [vmem:[#allocation10] sm:$0xf]
    %v456 = vld [vmem:[#allocation10 + $0x4] sm:$0xf]
    %v457 = vld [vmem:[#allocation10 + $0x8] sm:$0xf]
    %v458 = vld [vmem:[#allocation10 + $0xc] sm:$0xf]
    %v459 = vld [vmem:[#allocation10 + $0x10] sm:$0xf]
    %v460 = vld [vmem:[#allocation10 + $0x14] sm:$0xf]
    %v461 = vld [vmem:[#allocation10 + $0x18] sm:$0xf]
    %v462 = vld [vmem:[#allocation10 + $0x1c] sm:$0xf]
    %v463 = vld [vmem:[#allocation10 + $0x20] sm:$0xf]
    %v464 = vld [vmem:[#allocation10 + $0x24] sm:$0xf]
    %v465 = vld [vmem:[#allocation10 + $0x28] sm:$0xf]
    %v466 = vld [vmem:[#allocation10 + $0x2c] sm:$0xf]
    %v467 = vld [vmem:[#allocation10 + $0x30] sm:$0xf]
    %v468 = vld [vmem:[#allocation10 + $0x34] sm:$0xf]
    %v469 = vld [vmem:[#allocation10 + $0x38] sm:$0xf]
    %v470 = vld [vmem:[#allocation10 + $0x3c] sm:$0xf]
    %v471 = vld [vmem:[%s8] sm:$0x1]
    %v473 = vlaneseq
    %v474 = vshrl.u32 %v473, 7
    %v475 = vsub.s32 0, %v474
    %v476 = vrot.slane %v471, %v475
    %v494 = vunpack.c.l.b16 %v455
    %v495 = vunpack.c.l.b16 %v456
    %v496 = vunpack.c.l.b16 %v457
    %v497 = vunpack.c.l.b16 %v458
    %v498 = vunpack.c.l.b16 %v459
    %v499 = vunpack.c.l.b16 %v460
    %v500 = vunpack.c.l.b16 %v461
    %v501 = vunpack.c.l.b16 %v462
    %v502 = vunpack.c.l.b16 %v463
    %v503 = vunpack.c.l.b16 %v464
    %v504 = vunpack.c.l.b16 %v465
    %v505 = vunpack.c.l.b16 %v466
    %v506 = vunpack.c.l.b16 %v467
    %v507 = vunpack.c.l.b16 %v468
    %v508 = vunpack.c.l.b16 %v469
    %v509 = vunpack.c.l.b16 %v470
    %v510 = vpack.c.b16 %v495, %v494
    %v511 = vpack.c.b16 %v497, %v496
    %v512 = vpack.c.b16 %v499, %v498
    %v513 = vpack.c.b16 %v501, %v500
    %v514 = vpack.c.b16 %v503, %v502
    %v515 = vpack.c.b16 %v505, %v504
    %v516 = vpack.c.b16 %v507, %v506
    %v517 = vpack.c.b16 %v509, %v508
    %526 = vmatprep.subr.bf16.mxu0 0
    %527 = vmatpush1.bf16.msra.mxu0 %v510
    %528 = vmatprep.subr.bf16.mxu0 0
    %529 = vmatpush1.bf16.msra.mxu0 %v511
    %530 = vmatprep.subr.bf16.mxu0 0
    %531 = vmatpush1.bf16.msra.mxu0 %v512
    %532 = vmatprep.subr.bf16.mxu0 0
    %533 = vmatpush1.bf16.msra.mxu0 %v513
    %534 = vmatprep.subr.bf16.mxu0 0
    %535 = vmatpush1.bf16.msra.mxu0 %v514
    %536 = vmatprep.subr.bf16.mxu0 0
    %537 = vmatpush1.bf16.msra.mxu0 %v515
    %538 = vmatprep.subr.bf16.mxu0 0
    %539 = vmatpush1.bf16.msra.mxu0 %v516
    %540 = vmatprep.subr.bf16.mxu0 0
    %541 = vmatpush1.bf16.msra.mxu0 %v517
    %542 = vmatprep.subr.bf16.mxu0 0
    %543 = vmatpush1.bf16.msra.mxu0 0
    %544 = vmatprep.subr.bf16.mxu0 0
    %545 = vmatpush1.bf16.msra.mxu0 0
    %546 = vmatprep.subr.bf16.mxu0 0
    %547 = vmatpush1.bf16.msra.mxu0 0
    %548 = vmatprep.subr.bf16.mxu0 0
    %549 = vmatpush1.bf16.msra.mxu0 0
    %550 = vmatprep.subr.bf16.mxu0 0
    %551 = vmatpush1.bf16.msra.mxu0 0
    %552 = vmatprep.subr.bf16.mxu0 0
    %553 = vmatpush1.bf16.msra.mxu0 0
    %554 = vmatprep.subr.bf16.mxu0 0
    %555 = vmatpush1.bf16.msra.mxu0 0
    %556 = vmatprep.subr.bf16.mxu0 0
    %557 = vmatpush1.bf16.msra.mxu0 0
    %558 = vmatprep.mubr.bf16.mxu0 0
    %559 = vmatmul.mubr.bf16.gmra.mrb[0].mxu0 %v453
    %v560 = vpop.f32.mrb[0].mxu0
    %v561 = vadd.f32 %v476, %v560
    %v562 = vpop.f32.mrb[0].mxu0
    %v563 = vpop.f32.mrb[0].mxu0
    %v564 = vpop.f32.mrb[0].mxu0
    %565 = vdwg.mxu0
    %v566 = vld [vmem:[#allocation11] sm:$0xf]
    %v567 = vld [vmem:[#allocation11 + $0x4] sm:$0xf]
    %v568 = vld [vmem:[#allocation11 + $0x8] sm:$0xf]
    %v569 = vld [vmem:[#allocation11 + $0xc] sm:$0xf]
    %v570 = vld [vmem:[#allocation11 + $0x10] sm:$0xf]
    %v571 = vld [vmem:[#allocation11 + $0x14] sm:$0xf]
    %v572 = vld [vmem:[#allocation11 + $0x18] sm:$0xf]
    %v573 = vld [vmem:[#allocation11 + $0x1c] sm:$0xf]
    %v574 = vld [vmem:[#allocation11 + $0x20] sm:$0xf]
    %v575 = vld [vmem:[#allocation11 + $0x24] sm:$0xf]
    %v576 = vld [vmem:[#allocation11 + $0x28] sm:$0xf]
    %v577 = vld [vmem:[#allocation11 + $0x2c] sm:$0xf]
    %v578 = vld [vmem:[#allocation11 + $0x30] sm:$0xf]
    %v579 = vld [vmem:[#allocation11 + $0x34] sm:$0xf]
    %v580 = vld [vmem:[#allocation11 + $0x38] sm:$0xf]
    %v581 = vld [vmem:[#allocation11 + $0x3c] sm:$0xf]
    %v582 = vld [vmem:[%s10] sm:$0x1]
    %v584 = vlaneseq
    %v585 = vshrl.u32 %v584, 7
    %v586 = vsub.s32 0, %v585
    %v587 = vrot.slane %v582, %v586
    %v605 = vunpack.c.l.b16 %v566
    %v606 = vunpack.c.l.b16 %v567
    %v607 = vunpack.c.l.b16 %v568
    %v608 = vunpack.c.l.b16 %v569
    %v609 = vunpack.c.l.b16 %v570
    %v610 = vunpack.c.l.b16 %v571
    %v611 = vunpack.c.l.b16 %v572
    %v612 = vunpack.c.l.b16 %v573
    %v613 = vunpack.c.l.b16 %v574
    %v614 = vunpack.c.l.b16 %v575
    %v615 = vunpack.c.l.b16 %v576
    %v616 = vunpack.c.l.b16 %v577
    %v617 = vunpack.c.l.b16 %v578
    %v618 = vunpack.c.l.b16 %v579
    %v619 = vunpack.c.l.b16 %v580
    %v620 = vunpack.c.l.b16 %v581
    %v621 = vpack.c.b16 %v606, %v605
    %v622 = vpack.c.b16 %v608, %v607
    %v623 = vpack.c.b16 %v610, %v609
    %v624 = vpack.c.b16 %v612, %v611
    %v625 = vpack.c.b16 %v614, %v613
    %v626 = vpack.c.b16 %v616, %v615
    %v627 = vpack.c.b16 %v618, %v617
    %v628 = vpack.c.b16 %v620, %v619
    %637 = vmatprep.subr.bf16.mxu0 0
    %638 = vmatpush1.bf16.msra.mxu0 %v621
    %639 = vmatprep.subr.bf16.mxu0 0
    %640 = vmatpush1.bf16.msra.mxu0 %v622
    %641 = vmatprep.subr.bf16.mxu0 0
    %642 = vmatpush1.bf16.msra.mxu0 %v623
    %643 = vmatprep.subr.bf16.mxu0 0
    %644 = vmatpush1.bf16.msra.mxu0 %v624
    %645 = vmatprep.subr.bf16.mxu0 0
    %646 = vmatpush1.bf16.msra.mxu0 %v625
    %647 = vmatprep.subr.bf16.mxu0 0
    %648 = vmatpush1.bf16.msra.mxu0 %v626
    %649 = vmatprep.subr.bf16.mxu0 0
    %650 = vmatpush1.bf16.msra.mxu0 %v627
    %651 = vmatprep.subr.bf16.mxu0 0
    %652 = vmatpush1.bf16.msra.mxu0 %v628
    %653 = vmatprep.subr.bf16.mxu0 0
    %654 = vmatpush1.bf16.msra.mxu0 0
    %655 = vmatprep.subr.bf16.mxu0 0
    %656 = vmatpush1.bf16.msra.mxu0 0
    %657 = vmatprep.subr.bf16.mxu0 0
    %658 = vmatpush1.bf16.msra.mxu0 0
    %659 = vmatprep.subr.bf16.mxu0 0
    %660 = vmatpush1.bf16.msra.mxu0 0
    %661 = vmatprep.subr.bf16.mxu0 0
    %662 = vmatpush1.bf16.msra.mxu0 0
    %663 = vmatprep.subr.bf16.mxu0 0
    %664 = vmatpush1.bf16.msra.mxu0 0
    %665 = vmatprep.subr.bf16.mxu0 0
    %666 = vmatpush1.bf16.msra.mxu0 0
    %667 = vmatprep.subr.bf16.mxu0 0
    %668 = vmatpush1.bf16.msra.mxu0 0
    %669 = vmatprep.mubr.bf16.mxu0 0
    %670 = vmatmul.mubr.bf16.gmra.mrb[0].mxu0 %v454
    %v671 = vpop.f32.mrb[0].mxu0
    %v672 = vadd.f32 %v587, %v671
    %v673 = vpop.f32.mrb[0].mxu0
    %v674 = vpop.f32.mrb[0].mxu0
    %v675 = vpop.f32.mrb[0].mxu0
    %676 = vdwg.mxu0
    %677 = vadd.xlane.f32.xlu0 %v672
    %v678 = vpop.xlane.xlu0 %677
    %679 = vadd.xlane.f32.xlu0 %v561
    %v680 = vpop.xlane.xlu0 %679
    %v681 = vmul.f32 %v680, 0.25
    %v682 = vsub.f32 %v561, %v681
    %v683 = vadd.f32 %v682, %v678
    %v684 = vpack.c.bf16 %v683, %v683
    %685 = vst [vmem:[#allocation13] sm:$0xf] %v684
    // Predicated region
    $region70: #{tpu_custom_call.1} parent=1 // pred_check
      _
    $region71: #{tpu_custom_call.1} parent=1 // pred_check_branch
      %687 = sbr.rel (0) target = $region73
    $region72: #{tpu_custom_call.1} parent=1 // pred_region
      %s689 = ssub.s32 64, 64
      %690 = vsyncadd [#allocation4], %s689
      %s692 = sshll.u32 [#allocation13], 4
      %s693 = int_to_ptr.vmem [resolvable:$true] %s692
      %695 = dma.vmem_to_hbm [thread:$0]  %s693, 64, %s11, [#allocation4]
    $region73: #{tpu_custom_call.1} parent=1 // pred_fallthru
      _
    // Predicated region
    $region74: #{tpu_custom_call.1} parent=1 // pred_check
      _
    $region75: #{tpu_custom_call.1} parent=1 // pred_check_branch
      %697 = sbr.rel (0) target = $region77
    $region76: #{tpu_custom_call.1} parent=1 // pred_region
      %698 = dma.done [#allocation4], 64
    $region77: #{tpu_custom_call.1} parent=1 // pred_fallthru
      _
    %699 = vsyncpa [#allocation3], 1
    %700 = vsyncpa [#allocation6], 1
    %701 = vsyncpa [#allocation9], 1
    %702 = vsyncpa [#allocation12], 1
    %703 = vsyncpa [#allocation4], 1

// kernel: tpu_custom_call.1
$region0: #{tpu_custom_call.1}
  #allocation0 [shape = 'u32[]', space=smem, size = 0x4, offset = 0x4, fixed_abs, tag = 'smem constant byte address 0x4 - core index']
  #allocation1 [shape = 'u32[144,128]{1,0:T(1,128)}', space=vmem, size = 0x12000, scoped, tag = 'internal scratch']
  %s0 = inlined_call_operand.hbm [shape: bf16[8,16], index: 0, kind: input, shape index: {}]
  %s1 = inlined_call_operand.hbm [shape: bf16[16,128], index: 1, kind: input, shape index: {}]
  %s2 = inlined_call_operand.vmem [shape: f32[1,128], index: 2, kind: input, shape index: {}]
  %s3 = inlined_call_operand.hbm [shape: bf16[128,128], index: 3, kind: input, shape index: {}]
  %s4 = inlined_call_operand.vmem [shape: f32[1,128], index: 4, kind: input, shape index: {}]
  %s5 = inlined_call_operand.hbm [shape: bf16[128,256], index: 5, kind: input, shape index: {}]
  %s6 = inlined_call_operand.vmem [shape: f32[1,256], index: 6, kind: input, shape index: {}]
  %s7 = inlined_call_operand.hbm [shape: bf16[128,128], index: 7, kind: input, shape index: {}]
  %s8 = inlined_call_operand.vmem [shape: f32[1,128], index: 8, kind: input, shape index: {}]
  %s9 = inlined_call_operand.hbm [shape: bf16[128,128], index: 9, kind: input, shape index: {}]
  %s10 = inlined_call_operand.vmem [shape: f32[1,128], index: 10, kind: input, shape index: {}]
  %s11 = inlined_call_operand.hbm [shape: bf16[8,128], index: 11, kind: output, shape index: {}]
  %s12 = sld [smem:[#allocation0]]
  $region78: #{tpu_custom_call.1} parent=0
    _
  %s14 = ssub.s32 1, %s12
  %s15 = scalar_select 0, %s14, %s12
  $region1: #{tpu_custom_call.1} parent=0
    #allocation2 [shape = 'u8[2048]{0}', space=vmem, size = 0x800, scoped, tag = 'input window, operand 0, single buffered']
    #allocation3 [shape = 's32[1]{0}', space=sflag, size = 0x4, scoped, tag = 'scoped memory for tpu_custom_call.1']
    #allocation4 [shape = 's32[1]{0}', space=sflag, size = 0x4, scoped, tag = 'scoped memory for tpu_custom_call.1']
    #allocation5 [shape = 'u8[4096]{0}', space=vmem, size = 0x1000, scoped, tag = 'input window, operand 1, single buffered']
    #allocation6 [shape = 's32[1]{0}', space=sflag, size = 0x4, scoped, tag = 'scoped memory for tpu_custom_call.1']
    #allocation7 [shape = 'u8[32768]{0}', space=vmem, size = 0x8000, scoped, tag = 'input window, operand 3, single buffered']
    #allocation8 [shape = 'u8[65536]{0}', space=vmem, size = 0x10000, scoped, tag = 'input window, operand 5, single buffered']
    #allocation9 [shape = 's32[1]{0}', space=sflag, size = 0x4, scoped, tag = 'scoped memory for tpu_custom_call.1']
    #allocation10 [shape = 'u8[32768]{0}', space=vmem, size = 0x8000, scoped, tag = 'input window, operand 7, single buffered']
    #allocation11 [shape = 'u8[32768]{0}', space=vmem, size = 0x8000, scoped, tag = 'input window, operand 9, single buffered']
    #allocation12 [shape = 's32[1]{0}', space=sflag, size = 0x4, scoped, tag = 'scoped memory for tpu_custom_call.1']
    #allocation13 [shape = 'u8[2048]{0}', space=vmem, size = 0x800, scoped, tag = 'output window, operand 0, single buffered']
    %16 = vsyncpa [#allocation3], 0
    %17 = vsyncpa [#allocation6], 0
    %18 = vsyncpa [#allocation9], 0
    %19 = vsyncpa [#allocation12], 0
    %20 = vsyncpa [#allocation4], 0
    // Predicated region
    $region2: #{tpu_custom_call.1} parent=1 // pred_check
      _
    $region3: #{tpu_custom_call.1} parent=1 // pred_check_branch
      %22 = sbr.rel (0) target = $region5
    $region4: #{tpu_custom_call.1} parent=1 // pred_region
      %s24 = ssub.s32 64, 64
      %25 = vsyncadd [#allocation3], %s24
      %s27 = sshll.u32 [#allocation2], 4
      %s28 = int_to_ptr.vmem [resolvable:$true] %s27
      %30 = dma.hbm_to_vmem [thread:$0]  %s0, 64, %s28, [#allocation3]
    $region5: #{tpu_custom_call.1} parent=1 // pred_fallthru
      _
    // Predicated region
    $region6: #{tpu_custom_call.1} parent=1 // pred_check
      _
    $region7: #{tpu_custom_call.1} parent=1 // pred_check_branch
      %32 = sbr.rel (0) target = $region9
    $region8: #{tpu_custom_call.1} parent=1 // pred_region
      %s34 = ssub.s32 128, 128
      %35 = vsyncadd [#allocation6], %s34
      %s36 = sshll.u32 [#allocation5], 4
      %s37 = int_to_ptr.vmem [resolvable:$true] %s36
      %42 = dma.hbm_to_vmem [thread:$0]  %s1, 128, %s37, [#allocation6], 64, 64, 4
    $region9: #{tpu_custom_call.1} parent=1 // pred_fallthru
      _
    // Predicated region
    $region10: #{tpu_custom_call.1} parent=1 // pred_check
      _
    $region11: #{tpu_custom_call.1} parent=1 // pred_check_branch
      %44 = sbr.rel (0) target = $region13
    $region12: #{tpu_custom_call.1} parent=1 // pred_region
      _
    $region13: #{tpu_custom_call.1} parent=1 // pred_fallthru
      _
    // Predicated region
    $region14: #{tpu_custom_call.1} parent=1 // pred_check
      _
    $region15: #{tpu_custom_call.1} parent=1 // pred_check_branch
      %46 = sbr.rel (0) target = $region17
    $region16: #{tpu_custom_call.1} parent=1 // pred_region
      %s48 = ssub.s32 1024, 1024
      %49 = vsyncadd [#allocation6], %s48
      %s50 = sshll.u32 [#allocation7], 4
      %s51 = int_to_ptr.vmem [resolvable:$true] %s50
      %56 = dma.hbm_to_vmem [thread:$0]  %s3, 1024, %s51, [#allocation6], 64, 64, 4
    $region17: #{tpu_custom_call.1} parent=1 // pred_fallthru
      _
    // Predicated region
    $region18: #{tpu_custom_call.1} parent=1 // pred_check
      _
    $region19: #{tpu_custom_call.1} parent=1 // pred_check_branch
      %58 = sbr.rel (0) target = $region21
    $region20: #{tpu_custom_call.1} parent=1 // pred_region
      _
    $region21: #{tpu_custom_call.1} parent=1 // pred_fallthru
      _
    // Predicated region
    $region22: #{tpu_custom_call.1} parent=1 // pred_check
      _
    $region23: #{tpu_custom_call.1} parent=1 // pred_check_branch
      %60 = sbr.rel (0) target = $region25
    $region24: #{tpu_custom_call.1} parent=1 // pred_region
      %s62 = ssub.s32 2048, 2048
      %63 = vsyncadd [#allocation9], %s62
      %s64 = sshll.u32 [#allocation8], 4
      %s65 = int_to_ptr.vmem [resolvable:$true] %s64
      %70 = dma.hbm_to_vmem [thread:$0]  %s5, 2048, %s65, [#allocation9], 128, 128, 8
    $region25: #{tpu_custom_call.1} parent=1 // pred_fallthru
      _
    // Predicated region
    $region26: #{tpu_custom_call.1} parent=1 // pred_check
      _
    $region27: #{tpu_custom_call.1} parent=1 // pred_check_branch
      %72 = sbr.rel (0) target = $region29
    $region28: #{tpu_custom_call.1} parent=1 // pred_region
      _
    $region29: #{tpu_custom_call.1} parent=1 // pred_fallthru
      _
    // Predicated region
    $region30: #{tpu_custom_call.1} parent=1 // pred_check
      _
    $region31: #{tpu_custom_call.1} parent=1 // pred_check_branch
      %74 = sbr.rel (0) target = $region33
    $region32: #{tpu_custom_call.1} parent=1 // pred_region
      %s76 = ssub.s32 1024, 1024
      %77 = vsyncadd [#allocation9], %s76
      %s78 = sshll.u32 [#allocation10], 4
      %s79 = int_to_ptr.vmem [resolvable:$true] %s78
      %84 = dma.hbm_to_vmem [thread:$0]  %s7, 1024, %s79, [#allocation9], 64, 64, 4
    $region33: #{tpu_custom_call.1} parent=1 // pred_fallthru
      _
    // Predicated region
    $region34: #{tpu_custom_call.1} parent=1 // pred_check
      _
    $region35: #{tpu_custom_call.1} parent=1 // pred_check_branch
      %86 = sbr.rel (0) target = $region37
    $region36: #{tpu_custom_call.1} parent=1 // pred_region
      _
    $region37: #{tpu_custom_call.1} parent=1 // pred_fallthru
      _
    // Predicated region
    $region38: #{tpu_custom_call.1} parent=1 // pred_check
      _
    $region39: #{tpu_custom_call.1} parent=1 // pred_check_branch
      %88 = sbr.rel (0) target = $region41
    $region40: #{tpu_custom_call.1} parent=1 // pred_region
      %s90 = ssub.s32 1024, 1024
      %91 = vsyncadd [#allocation12], %s90
      %s92 = sshll.u32 [#allocation11], 4
      %s93 = int_to_ptr.vmem [resolvable:$true] %s92
      %98 = dma.hbm_to_vmem [thread:$0]  %s9, 1024, %s93, [#allocation12], 64, 64, 4
    $region41: #{tpu_custom_call.1} parent=1 // pred_fallthru
      _
    // Predicated region
    $region42: #{tpu_custom_call.1} parent=1 // pred_check
      _
    $region43: #{tpu_custom_call.1} parent=1 // pred_check_branch
      %100 = sbr.rel (0) target = $region45
    $region44: #{tpu_custom_call.1} parent=1 // pred_region
      _
    $region45: #{tpu_custom_call.1} parent=1 // pred_fallthru
      _
    // Predicated region
    $region46: #{tpu_custom_call.1} parent=1 // pred_check
      _
    $region47: #{tpu_custom_call.1} parent=1 // pred_check_branch
      %102 = sbr.rel (0) target = $region49
    $region48: #{tpu_custom_call.1} parent=1 // pred_region
      %103 = dma.done [#allocation3], 64
    $region49: #{tpu_custom_call.1} parent=1 // pred_fallthru
      _
    // Predicated region
    $region50: #{tpu_custom_call.1} parent=1 // pred_check
      _
    $region51: #{tpu_custom_call.1} parent=1 // pred_check_branch
      %105 = sbr.rel (0) target = $region53
    $region52: #{tpu_custom_call.1} parent=1 // pred_region
      %106 = dma.done [#allocation6], 128
    $region53: #{tpu_custom_call.1} parent=1 // pred_fallthru
      _
    // Predicated region
    $region54: #{tpu_custom_call.1} parent=1 // pred_check
      _
    $region55: #{tpu_custom_call.1} parent=1 // pred_check_branch
      %108 = sbr.rel (0) target = $region57
    $region56: #{tpu_custom_call.1} parent=1 // pred_region
      %109 = dma.done [#allocation6], 1024
    $region57: #{tpu_custom_call.1} parent=1 // pred_fallthru
      _
    // Predicated region
    $region58: #{tpu_custom_call.1} parent=1 // pred_check
      _
    $region59: #{tpu_custom_call.1} parent=1 // pred_check_branch
      %111 = sbr.rel (0) target = $region61
    $region60: #{tpu_custom_call.1} parent=1 // pred_region
      %112 = dma.done [#allocation9], 2048
    $region61: #{tpu_custom_call.1} parent=1 // pred_fallthru
      _
    // Predicated region
    $region62: #{tpu_custom_call.1} parent=1 // pred_check
      _
    $region63: #{tpu_custom_call.1} parent=1 // pred_check_branch
      %114 = sbr.rel (0) target = $region65
    $region64: #{tpu_custom_call.1} parent=1 // pred_region
      %115 = dma.done [#allocation9], 1024
    $region65: #{tpu_custom_call.1} parent=1 // pred_fallthru
      _
    // Predicated region
    $region66: #{tpu_custom_call.1} parent=1 // pred_check
      _
    $region67: #{tpu_custom_call.1} parent=1 // pred_check_branch
      %117 = sbr.rel (0) target = $region69
    $region68: #{tpu_custom_call.1} parent=1 // pred_region
      %118 = dma.done [#allocation12], 1024
    $region69: #{tpu_custom_call.1} parent=1 // pred_fallthru
      _
    %v120 = vld [vmem:[#allocation2] sm:$0xf]
    %v121 = vld [vmem:[#allocation5] sm:$0xf]
    %v122 = vld [vmem:[#allocation5 + $0x4] sm:$0xf]
    %v123 = vld [vmem:[%s2] sm:$0x1]
    %v125 = vlaneseq
    %v126 = vshrl.u32 %v125, 7
    %v127 = vsub.s32 0, %v126
    %v128 = vrot.slane %v123, %v127
    %v132 = vunpack.c.l.b16 %v121
    %v133 = vunpack.c.l.b16 %v122
    %v134 = vpack.c.b16 %v133, %v132
    %vm136 = vcmask 130048
    %v138 = vsel %vm136, %v120, 0
    %140 = vmatprep.subr.bf16.mxu0 0
    %141 = vmatpush1.bf16.msra.mxu0 %v134
    %142 = vmatprep.subr.bf16.mxu0 0
    %143 = vmatpush1.bf16.msra.mxu0 0
    %144 = vmatprep.subr.bf16.mxu0 0
    %145 = vmatpush1.bf16.msra.mxu0 0
    %146 = vmatprep.subr.bf16.mxu0 0
    %147 = vmatpush1.bf16.msra.mxu0 0
    %148 = vmatprep.subr.bf16.mxu0 0
    %149 = vmatpush1.bf16.msra.mxu0 0
    %150 = vmatprep.subr.bf16.mxu0 0
    %151 = vmatpush1.bf16.msra.mxu0 0
    %152 = vmatprep.subr.bf16.mxu0 0
    %153 = vmatpush1.bf16.msra.mxu0 0
    %154 = vmatprep.subr.bf16.mxu0 0
    %155 = vmatpush1.bf16.msra.mxu0 0
    %156 = vmatprep.subr.bf16.mxu0 0
    %157 = vmatpush1.bf16.msra.mxu0 0
    %158 = vmatprep.subr.bf16.mxu0 0
    %159 = vmatpush1.bf16.msra.mxu0 0
    %160 = vmatprep.subr.bf16.mxu0 0
    %161 = vmatpush1.bf16.msra.mxu0 0
    %162 = vmatprep.subr.bf16.mxu0 0
    %163 = vmatpush1.bf16.msra.mxu0 0
    %164 = vmatprep.subr.bf16.mxu0 0
    %165 = vmatpush1.bf16.msra.mxu0 0
    %166 = vmatprep.subr.bf16.mxu0 0
    %167 = vmatpush1.bf16.msra.mxu0 0
    %168 = vmatprep.subr.bf16.mxu0 0
    %169 = vmatpush1.bf16.msra.mxu0 0
    %170 = vmatprep.subr.bf16.mxu0 0
    %171 = vmatpush1.bf16.msra.mxu0 0
    %172 = vmatprep.mubr.bf16.mxu0 0
    %173 = vmatmul.mubr.bf16.gmra.mrb[0].mxu0 %v138
    %v174 = vpop.f32.mrb[0].mxu0
    %v175 = vadd.f32 %v128, %v174
    %v176 = vpop.f32.mrb[0].mxu0
    %v177 = vpop.f32.mrb[0].mxu0
    %v178 = vpop.f32.mrb[0].mxu0
    %179 = vdwg.mxu0
    %v180 = vmax.f32 %v175, 0.0
    %v181 = vpack.c.bf16 %v180, %v180
    %v182 = vld [vmem:[#allocation7] sm:$0xf]
    %v183 = vld [vmem:[#allocation7 + $0x4] sm:$0xf]
    %v184 = vld [vmem:[#allocation7 + $0x8] sm:$0xf]
    %v185 = vld [vmem:[#allocation7 + $0xc] sm:$0xf]
    %v186 = vld [vmem:[#allocation7 + $0x10] sm:$0xf]
    %v187 = vld [vmem:[#allocation7 + $0x14] sm:$0xf]
    %v188 = vld [vmem:[#allocation7 + $0x18] sm:$0xf]
    %v189 = vld [vmem:[#allocation7 + $0x1c] sm:$0xf]
    %v190 = vld [vmem:[#allocation7 + $0x20] sm:$0xf]
    %v191 = vld [vmem:[#allocation7 + $0x24] sm:$0xf]
    %v192 = vld [vmem:[#allocation7 + $0x28] sm:$0xf]
    %v193 = vld [vmem:[#allocation7 + $0x2c] sm:$0xf]
    %v194 = vld [vmem:[#allocation7 + $0x30] sm:$0xf]
    %v195 = vld [vmem:[#allocation7 + $0x34] sm:$0xf]
    %v196 = vld [vmem:[#allocation7 + $0x38] sm:$0xf]
    %v197 = vld [vmem:[#allocation7 + $0x3c] sm:$0xf]
    %v198 = vld [vmem:[%s4] sm:$0x1]
    %v200 = vlaneseq
    %v201 = vshrl.u32 %v200, 7
    %v202 = vsub.s32 0, %v201
    %v203 = vrot.slane %v198, %v202
    %v221 = vunpack.c.l.b16 %v182
    %v222 = vunpack.c.l.b16 %v183
    %v223 = vunpack.c.l.b16 %v184
    %v224 = vunpack.c.l.b16 %v185
    %v225 = vunpack.c.l.b16 %v186
    %v226 = vunpack.c.l.b16 %v187
    %v227 = vunpack.c.l.b16 %v188
    %v228 = vunpack.c.l.b16 %v189
    %v229 = vunpack.c.l.b16 %v190
    %v230 = vunpack.c.l.b16 %v191
    %v231 = vunpack.c.l.b16 %v192
    %v232 = vunpack.c.l.b16 %v193
    %v233 = vunpack.c.l.b16 %v194
    %v234 = vunpack.c.l.b16 %v195
    %v235 = vunpack.c.l.b16 %v196
    %v236 = vunpack.c.l.b16 %v197
    %v237 = vpack.c.b16 %v222, %v221
    %v238 = vpack.c.b16 %v224, %v223
    %v239 = vpack.c.b16 %v226, %v225
    %v240 = vpack.c.b16 %v228, %v227
    %v241 = vpack.c.b16 %v230, %v229
    %v242 = vpack.c.b16 %v232, %v231
    %v243 = vpack.c.b16 %v234, %v233
    %v244 = vpack.c.b16 %v236, %v235
    %253 = vmatprep.subr.bf16.mxu0 0
    %254 = vmatpush1.bf16.msra.mxu0 %v237
    %255 = vmatprep.subr.bf16.mxu0 0
    %256 = vmatpush1.bf16.msra.mxu0 %v238
    %257 = vmatprep.subr.bf16.mxu0 0
    %258 = vmatpush1.bf16.msra.mxu0 %v239
    %259 = vmatprep.subr.bf16.mxu0 0
    %260 = vmatpush1.bf16.msra.mxu0 %v240
    %261 = vmatprep.subr.bf16.mxu0 0
    %262 = vmatpush1.bf16.msra.mxu0 %v241
    %263 = vmatprep.subr.bf16.mxu0 0
    %264 = vmatpush1.bf16.msra.mxu0 %v242
    %265 = vmatprep.subr.bf16.mxu0 0
    %266 = vmatpush1.bf16.msra.mxu0 %v243
    %267 = vmatprep.subr.bf16.mxu0 0
    %268 = vmatpush1.bf16.msra.mxu0 %v244
    %269 = vmatprep.subr.bf16.mxu0 0
    %270 = vmatpush1.bf16.msra.mxu0 0
    %271 = vmatprep.subr.bf16.mxu0 0
    %272 = vmatpush1.bf16.msra.mxu0 0
    %273 = vmatprep.subr.bf16.mxu0 0
    %274 = vmatpush1.bf16.msra.mxu0 0
    %275 = vmatprep.subr.bf16.mxu0 0
    %276 = vmatpush1.bf16.msra.mxu0 0
    %277 = vmatprep.subr.bf16.mxu0 0
    %278 = vmatpush1.bf16.msra.mxu0 0
    %279 = vmatprep.subr.bf16.mxu0 0
    %280 = vmatpush1.bf16.msra.mxu0 0
    %281 = vmatprep.subr.bf16.mxu0 0
    %282 = vmatpush1.bf16.msra.mxu0 0
    %283 = vmatprep.subr.bf16.mxu0 0
    %284 = vmatpush1.bf16.msra.mxu0 0
    %285 = vmatprep.mubr.bf16.mxu0 0
    %286 = vmatmul.mubr.bf16.gmra.mrb[0].mxu0 %v181
    %v287 = vpop.f32.mrb[0].mxu0
    %v288 = vadd.f32 %v203, %v287
    %v289 = vpop.f32.mrb[0].mxu0
    %v290 = vpop.f32.mrb[0].mxu0
    %v291 = vpop.f32.mrb[0].mxu0
    %292 = vdwg.mxu0
    %v293 = vpack.c.bf16 %v288, %v288
    %v294 = vld [vmem:[#allocation8] sm:$0xff]
    %v295 = vld [vmem:[#allocation8 + $0x8] sm:$0xff]
    %v296 = vld [vmem:[#allocation8 + $0x10] sm:$0xff]
    %v297 = vld [vmem:[#allocation8 + $0x18] sm:$0xff]
    %v298 = vld [vmem:[#allocation8 + $0x20] sm:$0xff]
    %v299 = vld [vmem:[#allocation8 + $0x28] sm:$0xff]
    %v300 = vld [vmem:[#allocation8 + $0x30] sm:$0xff]
    %v301 = vld [vmem:[#allocation8 + $0x38] sm:$0xff]
    %v302 = vld [vmem:[#allocation8 + $0x40] sm:$0xff]
    %v303 = vld [vmem:[#allocation8 + $0x48] sm:$0xff]
    %v304 = vld [vmem:[#allocation8 + $0x50] sm:$0xff]
    %v305 = vld [vmem:[#allocation8 + $0x58] sm:$0xff]
    %v306 = vld [vmem:[#allocation8 + $0x60] sm:$0xff]
    %v307 = vld [vmem:[#allocation8 + $0x68] sm:$0xff]
    %v308 = vld [vmem:[#allocation8 + $0x70] sm:$0xff]
    %v309 = vld [vmem:[#allocation8 + $0x78] sm:$0xff]
    %v310 = vld [vmem:[%s6] sm:$0x3]
    %v312 = vlaneseq
    %v313 = vshrl.u32 %v312, 7
    %v314 = vsub.s32 0, %v313
    %v315 = vrot.slane %v310, %v314
    %v316 = vlaneseq
    %v317 = vshrl.u32 %v316, 7
    %v318 = vsub.s32 1, %v317
    %v319 = vrot.slane %v310, %v318
    %v338 = vunpack.c.l.b16 %v294
    %v339 = vunpack.c.h.b16 %v294
    %v340 = vunpack.c.l.b16 %v295
    %v341 = vunpack.c.h.b16 %v295
    %v342 = vunpack.c.l.b16 %v296
    %v343 = vunpack.c.h.b16 %v296
    %v344 = vunpack.c.l.b16 %v297
    %v345 = vunpack.c.h.b16 %v297
    %v346 = vunpack.c.l.b16 %v298
    %v347 = vunpack.c.h.b16 %v298
    %v348 = vunpack.c.l.b16 %v299
    %v349 = vunpack.c.h.b16 %v299
    %v350 = vunpack.c.l.b16 %v300
    %v351 = vunpack.c.h.b16 %v300
    %v352 = vunpack.c.l.b16 %v301
    %v353 = vunpack.c.h.b16 %v301
    %v354 = vunpack.c.l.b16 %v302
    %v355 = vunpack.c.h.b16 %v302
    %v356 = vunpack.c.l.b16 %v303
    %v357 = vunpack.c.h.b16 %v303
    %v358 = vunpack.c.l.b16 %v304
    %v359 = vunpack.c.h.b16 %v304
    %v360 = vunpack.c.l.b16 %v305
    %v361 = vunpack.c.h.b16 %v305
    %v362 = vunpack.c.l.b16 %v306
    %v363 = vunpack.c.h.b16 %v306
    %v364 = vunpack.c.l.b16 %v307
    %v365 = vunpack.c.h.b16 %v307
    %v366 = vunpack.c.l.b16 %v308
    %v367 = vunpack.c.h.b16 %v308
    %v368 = vunpack.c.l.b16 %v309
    %v369 = vunpack.c.h.b16 %v309
    %v370 = vpack.c.b16 %v340, %v338
    %v371 = vpack.c.b16 %v341, %v339
    %v372 = vpack.c.b16 %v344, %v342
    %v373 = vpack.c.b16 %v345, %v343
    %v374 = vpack.c.b16 %v348, %v346
    %v375 = vpack.c.b16 %v349, %v347
    %v376 = vpack.c.b16 %v352, %v350
    %v377 = vpack.c.b16 %v353, %v351
    %v378 = vpack.c.b16 %v356, %v354
    %v379 = vpack.c.b16 %v357, %v355
    %v380 = vpack.c.b16 %v360, %v358
    %v381 = vpack.c.b16 %v361, %v359
    %v382 = vpack.c.b16 %v364, %v362
    %v383 = vpack.c.b16 %v365, %v363
    %v384 = vpack.c.b16 %v368, %v366
    %v385 = vpack.c.b16 %v369, %v367
    %402 = vmatprep.subr.bf16.mxu0 %v371
    %403 = vmatpush1.bf16.msra.mxu0 %v370
    %404 = vmatprep.subr.bf16.mxu0 %v373
    %405 = vmatpush1.bf16.msra.mxu0 %v372
    %406 = vmatprep.subr.bf16.mxu0 %v375
    %407 = vmatpush1.bf16.msra.mxu0 %v374
    %408 = vmatprep.subr.bf16.mxu0 %v377
    %409 = vmatpush1.bf16.msra.mxu0 %v376
    %410 = vmatprep.subr.bf16.mxu0 %v379
    %411 = vmatpush1.bf16.msra.mxu0 %v378
    %412 = vmatprep.subr.bf16.mxu0 %v381
    %413 = vmatpush1.bf16.msra.mxu0 %v380
    %414 = vmatprep.subr.bf16.mxu0 %v383
    %415 = vmatpush1.bf16.msra.mxu0 %v382
    %416 = vmatprep.subr.bf16.mxu0 %v385
    %417 = vmatpush1.bf16.msra.mxu0 %v384
    %418 = vmatprep.subr.bf16.mxu0 0
    %419 = vmatpush1.bf16.msra.mxu0 0
    %420 = vmatprep.subr.bf16.mxu0 0
    %421 = vmatpush1.bf16.msra.mxu0 0
    %422 = vmatprep.subr.bf16.mxu0 0
    %423 = vmatpush1.bf16.msra.mxu0 0
    %424 = vmatprep.subr.bf16.mxu0 0
    %425 = vmatpush1.bf16.msra.mxu0 0
    %426 = vmatprep.subr.bf16.mxu0 0
    %427 = vmatpush1.bf16.msra.mxu0 0
    %428 = vmatprep.subr.bf16.mxu0 0
    %429 = vmatpush1.bf16.msra.mxu0 0
    %430 = vmatprep.subr.bf16.mxu0 0
    %431 = vmatpush1.bf16.msra.mxu0 0
    %432 = vmatprep.subr.bf16.mxu0 0
    %433 = vmatpush1.bf16.msra.mxu0 0
    %434 = vmatprep.mubr.bf16.mxu0 0
    %435 = vmatmul.mubr.bf16.gmra.mrb[0].mxu0 %v293
    %v436 = vpop.f32.mrb[0].mxu0
    %v437 = vadd.f32 %v315, %v436
    %v438 = vpop.f32.mrb[0].mxu0
    %v439 = vadd.f32 %v319, %v438
    %v440 = vpop.f32.mrb[0].mxu0
    %v441 = vpop.f32.mrb[0].mxu0
    %442 = vdwg.mxu0
    %v443 = vadd.f32 %v437, 3.0
    %v444 = vadd.f32 %v439, 3.0
    %v445 = vmax.f32 %v443, 0.0
    %v446 = vmax.f32 %v444, 0.0
    %v447 = vmin.f32 %v445, 6.0
    %v448 = vmin.f32 %v446, 6.0
    %v449 = vmul.f32 %v437, %v447
    %v450 = vmul.f32 %v439, %v448
    %v451 = vmul.f32 %v449, 0.16666667
    %v452 = vmul.f32 %v450, 0.16666667
    %v453 = vpack.c.bf16 %v451, %v451
    %v454 = vpack.c.bf16 %v452, %v452
    %v455 = vld [vmem:[#allocation10] sm:$0xf]
    %v456 = vld [vmem:[#allocation10 + $0x4] sm:$0xf]
    %v457 = vld [vmem:[#allocation10 + $0x8] sm:$0xf]
    %v458 = vld [vmem:[#allocation10 + $0xc] sm:$0xf]
    %v459 = vld [vmem:[#allocation10 + $0x10] sm:$0xf]
    %v460 = vld [vmem:[#allocation10 + $0x14] sm:$0xf]
    %v461 = vld [vmem:[#allocation10 + $0x18] sm:$0xf]
    %v462 = vld [vmem:[#allocation10 + $0x1c] sm:$0xf]
    %v463 = vld [vmem:[#allocation10 + $0x20] sm:$0xf]
    %v464 = vld [vmem:[#allocation10 + $0x24] sm:$0xf]
    %v465 = vld [vmem:[#allocation10 + $0x28] sm:$0xf]
    %v466 = vld [vmem:[#allocation10 + $0x2c] sm:$0xf]
    %v467 = vld [vmem:[#allocation10 + $0x30] sm:$0xf]
    %v468 = vld [vmem:[#allocation10 + $0x34] sm:$0xf]
    %v469 = vld [vmem:[#allocation10 + $0x38] sm:$0xf]
    %v470 = vld [vmem:[#allocation10 + $0x3c] sm:$0xf]
    %v471 = vld [vmem:[%s8] sm:$0x1]
    %v473 = vlaneseq
    %v474 = vshrl.u32 %v473, 7
    %v475 = vsub.s32 0, %v474
    %v476 = vrot.slane %v471, %v475
    %v494 = vunpack.c.l.b16 %v455
    %v495 = vunpack.c.l.b16 %v456
    %v496 = vunpack.c.l.b16 %v457
    %v497 = vunpack.c.l.b16 %v458
    %v498 = vunpack.c.l.b16 %v459
    %v499 = vunpack.c.l.b16 %v460
    %v500 = vunpack.c.l.b16 %v461
    %v501 = vunpack.c.l.b16 %v462
    %v502 = vunpack.c.l.b16 %v463
    %v503 = vunpack.c.l.b16 %v464
    %v504 = vunpack.c.l.b16 %v465
    %v505 = vunpack.c.l.b16 %v466
    %v506 = vunpack.c.l.b16 %v467
    %v507 = vunpack.c.l.b16 %v468
    %v508 = vunpack.c.l.b16 %v469
    %v509 = vunpack.c.l.b16 %v470
    %v510 = vpack.c.b16 %v495, %v494
    %v511 = vpack.c.b16 %v497, %v496
    %v512 = vpack.c.b16 %v499, %v498
    %v513 = vpack.c.b16 %v501, %v500
    %v514 = vpack.c.b16 %v503, %v502
    %v515 = vpack.c.b16 %v505, %v504
    %v516 = vpack.c.b16 %v507, %v506
    %v517 = vpack.c.b16 %v509, %v508
    %526 = vmatprep.subr.bf16.mxu0 0
    %527 = vmatpush1.bf16.msra.mxu0 %v510
    %528 = vmatprep.subr.bf16.mxu0 0
    %529 = vmatpush1.bf16.msra.mxu0 %v511
    %530 = vmatprep.subr.bf16.mxu0 0
    %531 = vmatpush1.bf16.msra.mxu0 %v512
    %532 = vmatprep.subr.bf16.mxu0 0
    %533 = vmatpush1.bf16.msra.mxu0 %v513
    %534 = vmatprep.subr.bf16.mxu0 0
    %535 = vmatpush1.bf16.msra.mxu0 %v514
    %536 = vmatprep.subr.bf16.mxu0 0
    %537 = vmatpush1.bf16.msra.mxu0 %v515
    %538 = vmatprep.subr.bf16.mxu0 0
    %539 = vmatpush1.bf16.msra.mxu0 %v516
    %540 = vmatprep.subr.bf16.mxu0 0
    %541 = vmatpush1.bf16.msra.mxu0 %v517
    %542 = vmatprep.subr.bf16.mxu0 0
    %543 = vmatpush1.bf16.msra.mxu0 0
    %544 = vmatprep.subr.bf16.mxu0 0
    %545 = vmatpush1.bf16.msra.mxu0 0
    %546 = vmatprep.subr.bf16.mxu0 0
    %547 = vmatpush1.bf16.msra.mxu0 0
    %548 = vmatprep.subr.bf16.mxu0 0
    %549 = vmatpush1.bf16.msra.mxu0 0
    %550 = vmatprep.subr.bf16.mxu0 0
    %551 = vmatpush1.bf16.msra.mxu0 0
    %552 = vmatprep.subr.bf16.mxu0 0
    %553 = vmatpush1.bf16.msra.mxu0 0
    %554 = vmatprep.subr.bf16.mxu0 0
    %555 = vmatpush1.bf16.msra.mxu0 0
    %556 = vmatprep.subr.bf16.mxu0 0
    %557 = vmatpush1.bf16.msra.mxu0 0
    %558 = vmatprep.mubr.bf16.mxu0 0
    %559 = vmatmul.mubr.bf16.gmra.mrb[0].mxu0 %v453
    %v560 = vpop.f32.mrb[0].mxu0
    %v561 = vadd.f32 %v476, %v560
    %v562 = vpop.f32.mrb[0].mxu0
    %v563 = vpop.f32.mrb[0].mxu0
    %v564 = vpop.f32.mrb[0].mxu0
    %565 = vdwg.mxu0
    %v566 = vld [vmem:[#allocation11] sm:$0xf]
    %v567 = vld [vmem:[#allocation11 + $0x4] sm:$0xf]
    %v568 = vld [vmem:[#allocation11 + $0x8] sm:$0xf]
    %v569 = vld [vmem:[#allocation11 + $0xc] sm:$0xf]
    %v570 = vld [vmem:[#allocation11 + $0x10] sm:$0xf]
    %v571 = vld [vmem:[#allocation11 + $0x14] sm:$0xf]
    %v572 = vld [vmem:[#allocation11 + $0x18] sm:$0xf]
    %v573 = vld [vmem:[#allocation11 + $0x1c] sm:$0xf]
    %v574 = vld [vmem:[#allocation11 + $0x20] sm:$0xf]
    %v575 = vld [vmem:[#allocation11 + $0x24] sm:$0xf]
    %v576 = vld [vmem:[#allocation11 + $0x28] sm:$0xf]
    %v577 = vld [vmem:[#allocation11 + $0x2c] sm:$0xf]
    %v578 = vld [vmem:[#allocation11 + $0x30] sm:$0xf]
    %v579 = vld [vmem:[#allocation11 + $0x34] sm:$0xf]
    %v580 = vld [vmem:[#allocation11 + $0x38] sm:$0xf]
    %v581 = vld [vmem:[#allocation11 + $0x3c] sm:$0xf]
    %v582 = vld [vmem:[%s10] sm:$0x1]
    %v584 = vlaneseq
    %v585 = vshrl.u32 %v584, 7
    %v586 = vsub.s32 0, %v585
    %v587 = vrot.slane %v582, %v586
    %v605 = vunpack.c.l.b16 %v566
    %v606 = vunpack.c.l.b16 %v567
    %v607 = vunpack.c.l.b16 %v568
    %v608 = vunpack.c.l.b16 %v569
    %v609 = vunpack.c.l.b16 %v570
    %v610 = vunpack.c.l.b16 %v571
    %v611 = vunpack.c.l.b16 %v572
    %v612 = vunpack.c.l.b16 %v573
    %v613 = vunpack.c.l.b16 %v574
    %v614 = vunpack.c.l.b16 %v575
    %v615 = vunpack.c.l.b16 %v576
    %v616 = vunpack.c.l.b16 %v577
    %v617 = vunpack.c.l.b16 %v578
    %v618 = vunpack.c.l.b16 %v579
    %v619 = vunpack.c.l.b16 %v580
    %v620 = vunpack.c.l.b16 %v581
    %v621 = vpack.c.b16 %v606, %v605
    %v622 = vpack.c.b16 %v608, %v607
    %v623 = vpack.c.b16 %v610, %v609
    %v624 = vpack.c.b16 %v612, %v611
    %v625 = vpack.c.b16 %v614, %v613
    %v626 = vpack.c.b16 %v616, %v615
    %v627 = vpack.c.b16 %v618, %v617
    %v628 = vpack.c.b16 %v620, %v619
    %637 = vmatprep.subr.bf16.mxu0 0
    %638 = vmatpush1.bf16.msra.mxu0 %v621
    %639 = vmatprep.subr.bf16.mxu0 0
    %640 = vmatpush1.bf16.msra.mxu0 %v622
    %641 = vmatprep.subr.bf16.mxu0 0
    %642 = vmatpush1.bf16.msra.mxu0 %v623
    %643 = vmatprep.subr.bf16.mxu0 0
    %644 = vmatpush1.bf16.msra.mxu0 %v624
    %645 = vmatprep.subr.bf16.mxu0 0
    %646 = vmatpush1.bf16.msra.mxu0 %v625
    %647 = vmatprep.subr.bf16.mxu0 0
    %648 = vmatpush1.bf16.msra.mxu0 %v626
    %649 = vmatprep.subr.bf16.mxu0 0
    %650 = vmatpush1.bf16.msra.mxu0 %v627
    %651 = vmatprep.subr.bf16.mxu0 0
    %652 = vmatpush1.bf16.msra.mxu0 %v628
    %653 = vmatprep.subr.bf16.mxu0 0
    %654 = vmatpush1.bf16.msra.mxu0 0
    %655 = vmatprep.subr.bf16.mxu0 0
    %656 = vmatpush1.bf16.msra.mxu0 0
    %657 = vmatprep.subr.bf16.mxu0 0
    %658 = vmatpush1.bf16.msra.mxu0 0
    %659 = vmatprep.subr.bf16.mxu0 0
    %660 = vmatpush1.bf16.msra.mxu0 0
    %661 = vmatprep.subr.bf16.mxu0 0
    %662 = vmatpush1.bf16.msra.mxu0 0
    %663 = vmatprep.subr.bf16.mxu0 0
    %664 = vmatpush1.bf16.msra.mxu0 0
    %665 = vmatprep.subr.bf16.mxu0 0
    %666 = vmatpush1.bf16.msra.mxu0 0
    %667 = vmatprep.subr.bf16.mxu0 0
    %668 = vmatpush1.bf16.msra.mxu0 0
    %669 = vmatprep.mubr.bf16.mxu0 0
    %670 = vmatmul.mubr.bf16.gmra.mrb[0].mxu0 %v454
    %v671 = vpop.f32.mrb[0].mxu0
    %v672 = vadd.f32 %v587, %v671
    %v673 = vpop.f32.mrb[0].mxu0
    %v674 = vpop.f32.mrb[0].mxu0
    %v675 = vpop.f32.mrb[0].mxu0
    %676 = vdwg.mxu0
    %677 = vadd.xlane.f32.xlu0 %v672
    %v678 = vpop.xlane.xlu0 %677
    %679 = vadd.xlane.f32.xlu0 %v561
    %v680 = vpop.xlane.xlu0 %679
    %v681 = vmul.f32 %v680, 0.25
    %v682 = vsub.f32 %v561, %v681
    %v683 = vadd.f32 %v682, %v678
    %v684 = vpack.c.bf16 %v683, %v683
    %685 = vst [vmem:[#allocation13] sm:$0xf] %v684
    // Predicated region
    $region70: #{tpu_custom_call.1} parent=1 // pred_check
      _
    $region71: #{tpu_custom_call.1} parent=1 // pred_check_branch
      %687 = sbr.rel (0) target = $region73
    $region72: #{tpu_custom_call.1} parent=1 // pred_region
      %s689 = ssub.s32 64, 64
      %690 = vsyncadd [#allocation4], %s689
      %s692 = sshll.u32 [#allocation13], 4
      %s693 = int_to_ptr.vmem [resolvable:$true] %s692
      %695 = dma.vmem_to_hbm [thread:$0]  %s693, 64, %s11, [#allocation4]
    $region73: #{tpu_custom_call.1} parent=1 // pred_fallthru
      _
    // Predicated region
    $region74: #{tpu_custom_call.1} parent=1 // pred_check
      _
    $region75: #{tpu_custom_call.1} parent=1 // pred_check_branch
      %697 = sbr.rel (0) target = $region77
    $region76: #{tpu_custom_call.1} parent=1 // pred_region
      %698 = dma.done [#allocation4], 64
    $region77: #{tpu_custom_call.1} parent=1 // pred_fallthru
      _
    %699 = vsyncpa [#allocation3], 1
    %700 = vsyncpa [#allocation6], 1
    %701 = vsyncpa [#allocation9], 1
    %702 = vsyncpa [#allocation12], 1
    %703 = vsyncpa [#allocation4], 1

</llo_original>
